<compile_context>
chip_gen: v7x
topology: tpu7x:2x2x1
jax: 0.10.0
libtpu: 0.0.40
codegen_flags: <defaults>
</compile_context>

<pallas_src>
import functools
import math

import jax
import jax.numpy as jnp
from jax import lax
from jax.experimental import pallas as pl
from jax.experimental.pallas import tpu as pltpu

BERT_DIM = 512
SEM_DIM = 64
NUM_INCENTIVE = 3
PAD = 0
EMB_VOCAB = 1024    # synthetic stand-in for EMBEDDING_SIZE = 30_000_000
WORD_VOCAB = 512    # synthetic stand-in for WORD_EMBEDDING_SIZE = 1_200_000
BN_EPS = 1e-5


# ----------------------------------------------------------------------------
# Pallas kernels
# ----------------------------------------------------------------------------
def _bert_encoder_kernel(x_ref, w_ref, b_ref, o_ref):
    """tanh(x @ W + b): bf16 operands, f32 MXU accumulation, f32 elementwise."""
    y = jnp.dot(x_ref[...], w_ref[...], preferred_element_type=jnp.float32)
    o_ref[...] = jnp.tanh(y + b_ref[...])


def bert_encode(x_f32, w_f32, b):
    """M-tiled, megacore-parallel surrogate BERT encoder linear."""
    M, K = x_f32.shape
    N = w_f32.shape[1]
    x = x_f32.astype(jnp.bfloat16)
    w = w_f32.astype(jnp.bfloat16)
    TM = 64 if (M % 64 == 0 and M >= 64) else M
    return pl.pallas_call(
        _bert_encoder_kernel,
        out_shape=jax.ShapeDtypeStruct((M, N), jnp.float32),
        grid=(M // TM,),
        in_specs=[
            pl.BlockSpec((TM, K), lambda i: (i, 0)),
            pl.BlockSpec((K, N), lambda i: (0, 0)),
            pl.BlockSpec((1, N), lambda i: (0, 0)),
        ],
        out_specs=pl.BlockSpec((TM, N), lambda i: (i, 0)),
        compiler_params=pltpu.CompilerParams(dimension_semantics=("parallel",)),
    )(x, w, b.reshape(1, N))


def _linear_relu_kernel(x_ref, w_ref, b_ref, o_ref):
    y = jnp.dot(x_ref[...], w_ref[...], preferred_element_type=jnp.float32)
    o_ref[...] = jnp.maximum(y + b_ref[...], 0.0)


def linear_relu(x, w, b):
    """Small full-block linear+relu (used once, for both bert_layer projections stacked)."""
    M, K = x.shape
    N = w.shape[1]
    return pl.pallas_call(
        _linear_relu_kernel,
        out_shape=jax.ShapeDtypeStruct((M, N), jnp.float32),
        grid=(1,),
        in_specs=[
            pl.BlockSpec((M, K), lambda i: (0, 0)),
            pl.BlockSpec((K, N), lambda i: (0, 0)),
            pl.BlockSpec((1, N), lambda i: (0, 0)),
        ],
        out_specs=pl.BlockSpec((M, N), lambda i: (0, 0)),
    )(x, w, b.reshape(1, N))


def _mlp3_kernel(x_ref, w1_ref, b1_ref, w2_ref, b2_ref, w3_ref, b3_ref, o_ref,
                 *, input_scale):
    """Fused relu-relu-linear MLP; all intermediates stay on-chip."""
    x = x_ref[...]
    if input_scale != 1.0:          # eval-mode BatchNorm1d with default running stats
        x = x * input_scale
    h = jnp.maximum(
        jnp.dot(x, w1_ref[...], preferred_element_type=jnp.float32) + b1_ref[...], 0.0)
    h = jnp.maximum(
        jnp.dot(h, w2_ref[...], preferred_element_type=jnp.float32) + b2_ref[...], 0.0)
    o_ref[...] = jnp.dot(h, w3_ref[...], preferred_element_type=jnp.float32) + b3_ref[...]


def fused_mlp3(x, w1, b1, w2, b2, w3, b3, input_scale=1.0):
    M = x.shape[0]
    N = w3.shape[1]
    kernel = functools.partial(_mlp3_kernel, input_scale=input_scale)
    args = (x, w1, b1.reshape(1, -1), w2, b2.reshape(1, -1), w3, b3.reshape(1, -1))
    in_specs = [pl.BlockSpec(a.shape, lambda i: (0, 0)) for a in args]
    return pl.pallas_call(
        kernel,
        out_shape=jax.ShapeDtypeStruct((M, N), jnp.float32),
        grid=(1,),
        in_specs=in_specs,
        out_specs=pl.BlockSpec((M, N), lambda i: (0, 0)),
    )(*args)


def _attention_kernel(q_ref, k_ref, v_ref, o_ref):
    """PRINT.attention: cosine similarity -> softmax(dim=1) -> matmul + mean(dim=1).

    torch.matmul(weight[B,L], value[B,L,Dv]).mean(dim=1) == sum_l mean_b(weight)[l]*value[b,l].
    """
    q = q_ref[...]                                              # [B, D]
    k = k_ref[...]                                              # [B, L, D]
    v = v_ref[...]                                              # [B, L, Dv]
    B, L, _ = k.shape
    dots = jnp.einsum('bqd,bkd->bqk', q[:, None, :], k,
                      preferred_element_type=jnp.float32)[:, 0, :]          # [B, L]
    qn = jnp.sqrt(jnp.sum(q * q, axis=-1, keepdims=True))                   # [B, 1]
    kn = jnp.sqrt(jnp.sum(k * k, axis=-1))                                  # [B, L]
    sim = dots / jnp.maximum(qn * kn, 1e-8)
    m = jnp.max(sim, axis=1, keepdims=True)
    e = jnp.exp(sim - m)
    w = e / jnp.sum(e, axis=1, keepdims=True)                               # [B, L]
    mean_w = jnp.broadcast_to(jnp.mean(w, axis=0, keepdims=True), (B, L))
    pooled = jnp.einsum('bqk,bkd->bqd', mean_w[:, None, :], v,
                        preferred_element_type=jnp.float32)                 # [B, 1, Dv]
    o_ref[...] = pooled[:, 0, :]


def attention(q, k, v):
    B, D = q.shape
    _, L, _ = k.shape
    Dv = v.shape[-1]
    return pl.pallas_call(
        _attention_kernel,
        out_shape=jax.ShapeDtypeStruct((B, Dv), jnp.float32),
        grid=(1,),
        in_specs=[
            pl.BlockSpec((B, D), lambda i: (0, 0)),
            pl.BlockSpec((B, L, D), lambda i: (0, 0, 0)),
            pl.BlockSpec((B, L, Dv), lambda i: (0, 0, 0)),
        ],
        out_specs=pl.BlockSpec((B, Dv), lambda i: (0, 0)),
    )(q, k, v)


def _dice(x):
    """RecBole Dice, alpha=0, eval-mode BatchNorm (running mean 0 / var 1)."""
    xn = x * (1.0 / math.sqrt(1.0 + BN_EPS))
    p = pl.reciprocal(1.0 + jnp.exp(-xn), approx=True)   # sigmoid via EUP recip
    return p * x


def _seq_att_kernel(q_ref, k_ref, m_ref, w1_ref, b1_ref, w2_ref, b2_ref,
                    w3_ref, b3_ref, o_ref, *, scale):
    """Fused SequenceAttLayer: build [q,k,q-k,q*k], dice-MLP, masked softmax, pool."""
    q = q_ref[...]                                      # [B, E]
    k = k_ref[...]                                      # [B, L, E]
    B, L, E = k.shape
    qb = jnp.broadcast_to(q[:, None, :], (B, L, E))

    def bmm(x3, w2d):                                   # [B,L,F] @ [F,H] -> [B,L,H]
        wb = jnp.broadcast_to(w2d[None, :, :], (B,) + w2d.shape)
        return lax.dot_general(x3, wb, (((2,), (1,)), ((0,), (0,))),
                               preferred_element_type=jnp.float32)

    # att_in @ W1 == qb@W1[:E] + k@W1[E:2E] + (qb-k)@W1[2E:3E] + (qb*k)@W1[3E:4E]
    w1 = w1_ref[...]                                    # [4E, H1]
    h = (bmm(qb, w1[0:E]) + bmm(k, w1[E:2 * E])
         + bmm(qb - k, w1[2 * E:3 * E]) + bmm(qb * k, w1[3 * E:4 * E])
         + b1_ref[...])
    h = _dice(h)
    h = _dice(bmm(h, w2_ref[...]) + b2_ref[...])        # [B, L, H2]
    s = jnp.sum(h * w3_ref[...], axis=-1) + b3_ref[...]  # [B, L] score head (16->1) kept on-chip

    # mask-fill(-inf) -> /sqrt(E) -> softmax(L) with fully-padded-row guard
    s = jnp.where(m_ref[...] > 0.5, -jnp.inf, s) / scale
    mx = jnp.maximum(jnp.max(s, axis=1, keepdims=True), -1e30)
    e = jnp.exp(s - mx)
    den = jnp.maximum(jnp.sum(e, axis=1, keepdims=True), 1e-30)
    wgt = e / den                                       # [B, L]
    pooled = jnp.einsum('bqk,bkd->bqd', wgt[:, None, :], k,
                        preferred_element_type=jnp.float32)      # [B, 1, E]
    o_ref[...] = pooled[:, 0, :]


def seq_att_layer(queries, keys, mask, p):
    """SequenceAttLayer(att_hidden_size=(4E,64,16), activation='dice', softmax_stag=True)."""
    B, L, E = keys.shape
    kernel = functools.partial(_seq_att_kernel, scale=math.sqrt(E))
    args = (queries, keys, mask.astype(jnp.float32),
            p["w1"], p["b1"].reshape(1, -1),
            p["w2"], p["b2"].reshape(1, -1),
            p["w3"].reshape(1, -1), p["b3"].reshape(1, 1))
    in_specs = [
        pl.BlockSpec(a.shape, (lambda i: (0, 0, 0)) if a.ndim == 3 else (lambda i: (0, 0)))
        for a in args
    ]
    return pl.pallas_call(
        kernel,
        out_shape=jax.ShapeDtypeStruct((B, E), jnp.float32),
        grid=(1,),
        in_specs=in_specs,
        out_specs=pl.BlockSpec((B, E), lambda i: (0, 0)),
    )(*args)


# ----------------------------------------------------------------------------
# Parameter init (deterministic, xavier_normal like the module's _init_weights)
# ----------------------------------------------------------------------------
def init_params(key, E):
    keys = jax.random.split(key, 40)
    it = iter(keys)

    def xavier(shape):
        fan_in, fan_out = shape
        std = math.sqrt(2.0 / (fan_in + fan_out))
        return std * jax.random.normal(next(it), shape, jnp.float32)

    params = {}
    params["embedding_layer"] = xavier((EMB_VOCAB, E)).at[PAD].set(0.0)
    params["word_embedding"] = xavier((WORD_VOCAB, BERT_DIM)).at[PAD].set(0.0)
    params["bert_enc_w"] = xavier((BERT_DIM, BERT_DIM))
    params["bert_enc_b"] = jnp.zeros((BERT_DIM,), jnp.float32)
    params["bert_layer_w"] = xavier((BERT_DIM, SEM_DIM))
    params["bert_layer_b"] = jnp.zeros((SEM_DIM,), jnp.float32)

    # --- pack the three incentive heads into one lane-dense fused MLP ---
    heads = []
    for out_dim in (NUM_INCENTIVE, 1, 1):               # inc_d, inc_0, inc_1
        heads.append({
            "w1": xavier((4 * SEM_DIM, 128)), "b1": jnp.zeros((128,), jnp.float32),
            "w2": xavier((128, 64)),          "b2": jnp.zeros((64,), jnp.float32),
            "w3": xavier((64, out_dim)),      "b3": jnp.zeros((out_dim,), jnp.float32),
        })
    params["inc_w1"] = jnp.concatenate([h["w1"] for h in heads], axis=1)   # [256, 384]
    params["inc_b1"] = jnp.concatenate([h["b1"] for h in heads], axis=0)   # [384]
    w2c = jnp.zeros((3 * 128, 3 * 64), jnp.float32)
    b2c = jnp.zeros((3 * 64,), jnp.float32)
    for i, h in enumerate(heads):
        w2c = w2c.at[i * 128:(i + 1) * 128, i * 64:(i + 1) * 64].set(h["w2"])
        b2c = b2c.at[i * 64:(i + 1) * 64].set(h["b2"])
    params["inc_w2"], params["inc_b2"] = w2c, b2c
    OUT_PAD = 128                                        # lane-dense output slab
    w3c = jnp.zeros((3 * 64, OUT_PAD), jnp.float32)
    b3c = jnp.zeros((OUT_PAD,), jnp.float32)
    col = 0
    for i, h in enumerate(heads):
        od = h["w3"].shape[1]
        w3c = w3c.at[i * 64:(i + 1) * 64, col:col + od].set(h["w3"])
        b3c = b3c.at[col:col + od].set(h["b3"])
        col += od
    params["inc_w3"], params["inc_b3"] = w3c, b3c

    params["seq_att"] = {
        "w1": xavier((4 * E, 64)), "b1": jnp.zeros((64,), jnp.float32),
        "w2": xavier((64, 16)),    "b2": jnp.zeros((16,), jnp.float32),
        "w3": xavier((16, 1)),     "b3": jnp.zeros((1,), jnp.float32),
    }
    params["dnn_w1"] = xavier((30 * E + SEM_DIM, 128))
    params["dnn_b1"] = jnp.zeros((128,), jnp.float32)
    params["dnn_w2"] = xavier((128, 64))
    params["dnn_b2"] = jnp.zeros((64,), jnp.float32)
    pred_w = xavier((64, 1))
    pred_b = jnp.zeros((1,), jnp.float32)
    # prediction head padded to 128 output lanes (no (...,1) out_spec)
    params["dnn_w3p"] = jnp.zeros((64, 128), jnp.float32).at[:, 0:1].set(pred_w)
    params["dnn_b3p"] = jnp.zeros((128,), jnp.float32).at[0:1].set(pred_b)
    params["w_noise"] = jnp.zeros((4 * SEM_DIM, NUM_INCENTIVE), jnp.float32)  # unused in eval
    return params


# ----------------------------------------------------------------------------
# Forward pass (glue in plain JAX, hot paths in Pallas)
# ----------------------------------------------------------------------------
def tokenization(queryTokenList, titleTokenList, N):
    cls = jnp.full((N, 1), 101, jnp.int32)
    sep1 = jnp.full((N, 1), 102, jnp.int32)
    sep2 = jnp.full((N, 1), 102, jnp.int32)
    padding = jnp.zeros((N, 32 - 3 - 2 * 10), jnp.int32)
    input_ids = jnp.concatenate(
        [cls, queryTokenList.astype(jnp.int32), sep1,
         titleTokenList.astype(jnp.int32), sep2, padding], axis=1)
    input_mask = (input_ids != 0).astype(jnp.int32)
    token_type_ids = jnp.concatenate(
        [jnp.zeros((N, 12)), jnp.ones((N, 11)), jnp.zeros((N, 9))], axis=1
    ).astype(jnp.int32)
    return input_ids, input_mask, token_type_ids


def print_forward(params, inp, gumbel_key):
    B, L = inp["AdIDList"].shape
    emb = params["embedding_layer"]

    def elookup(idx):
        return emb[idx % EMB_VOCAB]

    target_emb = elookup(inp["AdID"] % 20000000)
    advertiser_id_emb = elookup(inp["AdvertiserID"] % 20000000 + 2 ** 20)
    depth_emb = elookup(inp["Depth"])
    position_emb = elookup(inp["Position"])
    description_id_emb = elookup(inp["DescriptionID"] % 20000000 + 2 ** 20 * 2)
    user_emb = elookup(inp["user_id"] % 20000000 + 2 ** 20 * 3)
    query_emb = elookup(inp["QueryID"] % 20000000 + 2 ** 20 * 4)
    keyword_emb = elookup(inp["KeywordID"] % 20000000 + 2 ** 20 * 5)
    title_emb = elookup(inp["TitleID"] % 20000000 + 2 ** 20 * 6)
    title_token_emb = elookup(inp["TitleToken"] % 20000000 + 2 ** 20 * 7).reshape(B, -1)
    query_token_emb = elookup(inp["QueryToken"] % 20000000 + 2 ** 20 * 8).reshape(B, -1)
    adidlist_feat = inp["AdIDList"].reshape(B, -1)
    adidlist_emb = elookup(adidlist_feat)

    queryTokenList = jnp.concatenate(
        [inp["QueryToken"], inp["QueryTokenList"].reshape(B * L, -1)], axis=0)
    titleTokenList = jnp.concatenate(
        [inp["TitleToken"], inp["TitleTokenList"].reshape(B * L, -1)], axis=0)
    input_ids, input_mask, token_type_ids = tokenization(queryTokenList, titleTokenList, B * (L + 1))

    # --- BERT surrogate: word embedding + M-tiled bf16 Pallas linear+tanh ---
    # TODO(synk): attention_mask / token_type_ids are not consumed by the surrogate encoder.
    word_tok = params["word_embedding"][input_ids % WORD_VOCAB]        # [N, 32, BERT_DIM]
    N, T, D = word_tok.shape
    bert_sequence_out = bert_encode(
        word_tok.reshape(N * T, D), params["bert_enc_w"], params["bert_enc_b"]
    ).reshape(N, T, D)

    ad_hoc_bert_sequence_out = bert_sequence_out[:B]
    history_bert_sequence_out = bert_sequence_out[B:]
    ad_hoc_relevance_raw = ad_hoc_bert_sequence_out[:, 0].reshape(B, -1)
    history_relevance = history_bert_sequence_out[:, 0].reshape(B, L, -1)
    query_semantic_embedding = jnp.mean(ad_hoc_bert_sequence_out[:, 1:1 + L], axis=1).reshape(B, -1)
    history_query_semantic_embedding = jnp.mean(
        history_bert_sequence_out[:, 1:1 + L], axis=1).reshape(B, L, -1)

    intent_aware = attention(query_semantic_embedding, history_query_semantic_embedding,
                             history_relevance)
    category_aware = attention(target_emb, adidlist_emb, history_relevance)
    relevance_preference_raw = intent_aware * category_aware

    # bert_layer (Linear 512->64 + ReLU) applied to both inputs with one stacked kernel
    proj = linear_relu(
        jnp.concatenate([ad_hoc_relevance_raw, relevance_preference_raw], axis=0),
        params["bert_layer_w"], params["bert_layer_b"])
    ad_hoc_relevance = proj[:B]
    relevance_preference = proj[B:]

    relevance_inputs = jnp.concatenate(
        [ad_hoc_relevance, relevance_preference,
         ad_hoc_relevance - relevance_preference,
         ad_hoc_relevance * relevance_preference], axis=1)           # [B, 4*SEM_DIM]

    # one fused kernel for all three incentive heads (BatchNorm folded as input_scale)
    inc = fused_mlp3(relevance_inputs,
                     params["inc_w1"], params["inc_b1"],
                     params["inc_w2"], params["inc_b2"],
                     params["inc_w3"], params["inc_b3"],
                     input_scale=1.0 / math.sqrt(1.0 + BN_EPS))      # [B, 128]
    clean_logits = inc[:, 0:NUM_INCENTIVE]
    y0 = jax.nn.softplus(inc[:, NUM_INCENTIVE:NUM_INCENTIVE + 1])
    y1 = -jax.nn.softplus(inc[:, NUM_INCENTIVE + 1:NUM_INCENTIVE + 2])
    y2 = jnp.zeros((B, 1), jnp.float32)

    # noisy_logits in eval mode: logits = clean_logits
    top_types = jax.nn.softmax(clean_logits, axis=1)
    logits = clean_logits

    # gumbel_softmax_sampling (mu=0, beta=1, tau=0.1)
    p = jax.nn.softmax(logits, axis=1)
    y = jax.random.uniform(gumbel_key, logits.shape, jnp.float32) + 1e-25
    g = 0.0 - 1.0 * jnp.log(-jnp.log(y))
    t = jax.nn.softmax((jnp.log(p) + g) / 0.1, axis=1)

    y_all = jnp.concatenate([y0, y1, y2], axis=1)
    z = jnp.sum(t * y_all, axis=1, keepdims=True)

    mask = adidlist_feat == 0
    pool_emb_adidlist = seq_att_layer(target_emb, adidlist_emb, mask, params["seq_att"])

    mlp_input = jnp.concatenate(
        (user_emb, target_emb, advertiser_id_emb, depth_emb, position_emb,
         description_id_emb, query_emb, keyword_emb, title_emb, title_token_emb,
         query_token_emb, pool_emb_adidlist, ad_hoc_relevance), axis=1)   # [B, 30E+SEM_DIM]

    # fused dnn_mlp_layers + dnn_predict_layers (prediction head lane-padded to 128)
    dnn_out = fused_mlp3(mlp_input,
                         params["dnn_w1"], params["dnn_b1"],
                         params["dnn_w2"], params["dnn_b2"],
                         params["dnn_w3p"], params["dnn_b3p"])       # [B, 128]
    output = dnn_out[:, 0:1] + z
    # (the PyTorch module prints t[0], z[0], output[0] here; omitted to keep stdout clean)
    output = jax.nn.sigmoid(output)

    return {
        "summary_dic": {},
        "embed_hook": {"mlp_input": mlp_input},
        "scores": output,
        "types_sum": jnp.sum(top_types, axis=0),
    }


# ----------------------------------------------------------------------------
# Main
# ----------------------------------------------------------------------------
if __name__ == "__main__":
    E = 16     # config.embedding_size
    B = 2      # batch
    L = 4      # config.max_his_len

    param_key, data_key, gumbel_key = jax.random.split(jax.random.PRNGKey(0), 3)
    params = init_params(param_key, E)

    dk = jax.random.split(data_key, 16)

    def rint(k, shape, lo=1, hi=1000):
        return jax.random.randint(k, shape, lo, hi, dtype=jnp.int32)

    inputs = {
        "AdID": rint(dk[0], (B,)),
        "AdvertiserID": rint(dk[1], (B,)),
        "Depth": rint(dk[2], (B,), 1, 4),
        "Position": rint(dk[3], (B,), 1, 4),
        "DescriptionID": rint(dk[4], (B,)),
        "user_id": rint(dk[5], (B,)),
        "QueryID": rint(dk[6], (B,)),
        "KeywordID": rint(dk[7], (B,)),
        "TitleID": rint(dk[8], (B,)),
        "TitleToken": rint(dk[9], (B, 10), 1, 200),
        "QueryToken": rint(dk[10], (B, 10), 1, 200),
        "AdIDList": rint(dk[11], (B, L), 0, 1000),          # 0 == PAD exercises the mask
        "QueryTokenList": rint(dk[12], (B, L, 10), 1, 200),
        "TitleTokenList": rint(dk[13], (B, L, 10), 1, 200),
    }
    # make sure each history row has at least one non-pad entry (fully-masked rows are
    # also handled by the in-kernel softmax guard, but keep the data well-defined)
    inputs["AdIDList"] = inputs["AdIDList"].at[:, 0].set(
        jnp.maximum(inputs["AdIDList"][:, 0], 1))

    out = print_forward(params, inputs, gumbel_key)
    jax.block_until_ready(out["scores"])

    assert out["scores"].shape == (B, 1)
    assert out["types_sum"].shape == (NUM_INCENTIVE,)
    assert out["embed_hook"]["mlp_input"].shape == (B, 30 * E + SEM_DIM)
    assert bool(jnp.all(jnp.isfinite(out["scores"])))
    print("KERNEL_OK")
</pallas_src>

<mosaic_0001>
module attributes {stable_mosaic.version = 11 : i64} {
  func.func @_bert_encoder_kernel(%arg0: i32, %arg1: memref<64x512xbf16, #tpu.memory_space<vmem>>, %arg2: memref<512x512xbf16, #tpu.memory_space<vmem>>, %arg3: memref<1x512xf32, #tpu.memory_space<vmem>>, %arg4: memref<64x512xf32, #tpu.memory_space<vmem>>) attributes {dimension_semantics = [#tpu.dimension_semantics<parallel>], iteration_bounds = array<i64: 5>, scalar_prefetch = 0 : i64, scratch_operands = 0 : i64, tpu.core_type = #tpu.core_type<tc>, window_params = [{transform_indices = @transform_0, window_bounds = array<i64: 64, 512>}, {pipeline_mode = #tpu.pipeline_mode<synchronous>, transform_indices = @transform_1, window_bounds = array<i64: 512, 512>}, {pipeline_mode = #tpu.pipeline_mode<synchronous>, transform_indices = @transform_2, window_bounds = array<i64: 1, 512>}, {transform_indices = @transform_3, window_bounds = array<i64: 64, 512>}]} {
    %c0 = arith.constant 0 : index
    %c0_0 = arith.constant 0 : index
    %0 = vector.load %arg1[%c0, %c0_0] : memref<64x512xbf16, #tpu.memory_space<vmem>>, vector<64x512xbf16>
    %c0_1 = arith.constant 0 : index
    %c0_2 = arith.constant 0 : index
    %1 = vector.load %arg2[%c0_1, %c0_2] : memref<512x512xbf16, #tpu.memory_space<vmem>>, vector<512x512xbf16>
    %cst = arith.constant dense<0.000000e+00> : vector<64x512xf32>
    %2 = tpu.matmul %0, %1, %cst {dimension_numbers = #tpu.dot_dimension_numbers<[1], [0], [0], [1], [0, 0, 1, 1], [], []>} : vector<64x512xbf16>, vector<512x512xbf16>, vector<64x512xf32> -> vector<64x512xf32>
    %c0_3 = arith.constant 0 : index
    %c0_4 = arith.constant 0 : index
    %3 = vector.load %arg3[%c0_3, %c0_4] : memref<1x512xf32, #tpu.memory_space<vmem>>, vector<1x512xf32>
    %4 = vector.broadcast %3 : vector<1x512xf32> to vector<64x512xf32>
    %5 = arith.addf %2, %4 : vector<64x512xf32>
    %6 = math.tanh %5 : vector<64x512xf32>
    %c0_5 = arith.constant 0 : index
    %c0_6 = arith.constant 0 : index
    %7 = vector.load %arg4[%c0_5, %c0_6] : memref<64x512xf32, #tpu.memory_space<vmem>>, vector<64x512xf32>
    tpu.vector_store %arg4[%c0_5, %c0_6], %6 {strides = array<i32>} : memref<64x512xf32, #tpu.memory_space<vmem>>, vector<64x512xf32>,
    return
  }
  func.func @transform_0(%arg0: i32) -> (i32, i32) {
    %c0_i32 = arith.constant 0 : i32
    %c0_i32_0 = arith.constant 0 : i32
    return %arg0, %c0_i32 : i32, i32
  }
  func.func @transform_1(%arg0: i32) -> (i32, i32) {
    %c0_i32 = arith.constant 0 : i32
    %c0_i32_0 = arith.constant 0 : i32
    %c0_i32_1 = arith.constant 0 : i32
    return %c0_i32, %c0_i32_0 : i32, i32
  }
  func.func @transform_2(%arg0: i32) -> (i32, i32) {
    %c0_i32 = arith.constant 0 : i32
    %c0_i32_0 = arith.constant 0 : i32
    %c0_i32_1 = arith.constant 0 : i32
    return %c0_i32, %c0_i32_0 : i32, i32
  }
  func.func @transform_3(%arg0: i32) -> (i32, i32) {
    %c0_i32 = arith.constant 0 : i32
    %c0_i32_0 = arith.constant 0 : i32
    return %arg0, %c0_i32 : i32, i32
  }
}

</mosaic_0001>

<llo_original>
// kernel: tpu_custom_call.1
$region0: #{tpu_custom_call.1}
  #allocation0 [shape = 'u32[]', space=smem, size = 0x4, offset = 0x4, fixed_abs, tag = 'smem constant byte address 0x4 - core index']
  #allocation1 [shape = 'u32[144,128]{1,0:T(1,128)}', space=vmem, size = 0x12000, scoped, tag = 'internal scratch']
  %s0 = inlined_call_operand.hbm [shape: bf16[320,512], index: 0, kind: input, shape index: {}]
  %s1 = inlined_call_operand.hbm [shape: bf16[512,512], index: 1, kind: input, shape index: {}]
  %s2 = inlined_call_operand.vmem [shape: f32[1,512], index: 2, kind: input, shape index: {}]
  %s3 = inlined_call_operand.hbm [shape: f32[320,512], index: 3, kind: output, shape index: {}]
  %s4 = sld [smem:[#allocation0]]
  $region53: #{tpu_custom_call.1} parent=0
    _
  %s6 = ssub.s32 1, %s4
  %s7 = scalar_select 0, %s6, %s4
  $region1: #{tpu_custom_call.1} parent=0
    #allocation2 [shape = 'u8[131072]{0}', space=vmem, size = 0x20000, scoped, tag = 'input window, operand 0']
    #allocation3 [shape = 's32[2]{0}', space=sflag, size = 0x8, scoped, tag = 'scoped memory for tpu_custom_call.1']
    #allocation4 [shape = 's32[2]{0}', space=sflag, size = 0x8, scoped, tag = 'scoped memory for tpu_custom_call.1']
    #allocation5 [shape = 'u8[524288]{0}', space=vmem, size = 0x80000, scoped, tag = 'input window, operand 1, single buffered']
    #allocation6 [shape = 's32[1]{0}', space=sflag, size = 0x4, scoped, tag = 'scoped memory for tpu_custom_call.1']
    #allocation7 [shape = 'u8[262144]{0}', space=vmem, size = 0x40000, scoped, tag = 'output window, operand 0']
    %8 = vsyncpa [#allocation3], 0
    %s9 = scalar_lea.sflag [#allocation3], 1
    %10 = vsyncpa %s9, 0
    %11 = vsyncpa [#allocation6], 0
    %12 = vsyncpa [#allocation4], 0
    %s13 = scalar_lea.sflag [#allocation4], 1
    %14 = vsyncpa %s13, 0
    loop: start=0, step=1, limit=7
    $region2: #{tpu_custom_call.1} parent=1 // loop_pre_header
      _
    $region3: #{tpu_custom_call.1} parent=1 // loop_header
      %s16 = sphi 0, %s20
      %p17 = scmp.ge.s32.totalorder %s16, 7
      %s26 = sphi 0, %s28
      %s29 = sphi 0, %s26
      %s30 = sphi 0, %s29
      %s46 = sphi 0, %s30
      %s50 = sphi 0, %s50
      %s52 = sphi 0, %s50
      %s53 = sphi 0, %s52
      %s67 = sphi 0, %s53
      %s71 = sphi 0, %s71
      %s73 = sphi 0, %s71
      %s74 = sphi 0, %s73
      %s88 = sphi 0, %s74
      %s94 = sphi 0, %s96
      %s97 = sphi 0, %s94
      %s98 = sphi 0, %s97
      %s114 = sphi 0, %s98
    $region4: #{tpu_custom_call.1} parent=1 // loop_header_branch
      %19 = sbr.rel (%p17) target = $region8
    $region5: #{tpu_custom_call.1} parent=1 // loop_body
      %s21 = ssub.s32 %s16, 1
      %s22 = ssub.s32 %s16, 2
      %s23 = sadd.s32 %s16, 1
      %s24 = ssub.s32 %s16, %s23
      %p25 = scmp.eq.s32.totalorder %s24, 0
      %s27 = sadd.s32 %s26, 1
      %s28 = scalar_select %p25, %s26, %s27
      %p31 = pneg %p25
      %p32 = scmp.eq.s32.totalorder %s16, 4
      %p33 = por %p31, %p32
      %p34 = scmp.ne.s32.totalorder %s26, %s29
      %p35 = scmp.eq.s32.totalorder %s16, 0
      %p36 = por %p34, %p35
      %p37 = scmp.ne.s32.totalorder %s26, %s29
      %p38 = scmp.eq.s32.totalorder %s21, 4
      %p39 = por %p37, %p38
      %p40 = scmp.ne.s32.totalorder %s29, %s30
      %p41 = scmp.eq.s32.totalorder %s21, 0
      %p42 = por %p40, %p41
      %p43 = scmp.ne.s32.totalorder %s29, %s30
      %p44 = scmp.eq.s32.totalorder %s22, 4
      %p45 = por %p43, %p44
      %p47 = scmp.ne.s32.totalorder %s30, %s46
      %p48 = scmp.eq.s32.totalorder %s22, 0
      %p49 = por %p47, %p48
      %s51 = sadd.s32 %s50, 1
      %p54 = scmp.eq.s32.totalorder %s16, 4
      %p55 = scmp.ne.s32.totalorder %s50, %s52
      %p56 = scmp.eq.s32.totalorder %s16, 0
      %p57 = por %p55, %p56
      %p58 = scmp.ne.s32.totalorder %s50, %s52
      %p59 = scmp.eq.s32.totalorder %s21, 4
      %p60 = por %p58, %p59
      %p61 = scmp.ne.s32.totalorder %s52, %s53
      %p62 = scmp.eq.s32.totalorder %s21, 0
      %p63 = por %p61, %p62
      %p64 = scmp.ne.s32.totalorder %s52, %s53
      %p65 = scmp.eq.s32.totalorder %s22, 4
      %p66 = por %p64, %p65
      %p68 = scmp.ne.s32.totalorder %s53, %s67
      %p69 = scmp.eq.s32.totalorder %s22, 0
      %p70 = por %p68, %p69
      %s72 = sadd.s32 %s71, 1
      %p75 = scmp.eq.s32.totalorder %s16, 4
      %p76 = scmp.ne.s32.totalorder %s71, %s73
      %p77 = scmp.eq.s32.totalorder %s16, 0
      %p78 = por %p76, %p77
      %p79 = scmp.ne.s32.totalorder %s71, %s73
      %p80 = scmp.eq.s32.totalorder %s21, 4
      %p81 = por %p79, %p80
      %p82 = scmp.ne.s32.totalorder %s73, %s74
      %p83 = scmp.eq.s32.totalorder %s21, 0
      %p84 = por %p82, %p83
      %p85 = scmp.ne.s32.totalorder %s73, %s74
      %p86 = scmp.eq.s32.totalorder %s22, 4
      %p87 = por %p85, %p86
      %p89 = scmp.ne.s32.totalorder %s74, %s88
      %p90 = scmp.eq.s32.totalorder %s22, 0
      %p91 = por %p89, %p90
      %s92 = ssub.s32 %s16, %s23
      %p93 = scmp.eq.s32.totalorder %s92, 0
      %s95 = sadd.s32 %s94, 1
      %s96 = scalar_select %p93, %s94, %s95
      %p99 = pneg %p93
      %p100 = scmp.eq.s32.totalorder %s16, 4
      %p101 = por %p99, %p100
      %p102 = scmp.ne.s32.totalorder %s94, %s97
      %p103 = scmp.eq.s32.totalorder %s16, 0
      %p104 = por %p102, %p103
      %p105 = scmp.ne.s32.totalorder %s94, %s97
      %p106 = scmp.eq.s32.totalorder %s21, 4
      %p107 = por %p105, %p106
      %p108 = scmp.ne.s32.totalorder %s97, %s98
      %p109 = scmp.eq.s32.totalorder %s21, 0
      %p110 = por %p108, %p109
      %p111 = scmp.ne.s32.totalorder %s97, %s98
      %p112 = scmp.eq.s32.totalorder %s22, 4
      %p113 = por %p111, %p112
      %p115 = scmp.ne.s32.totalorder %s98, %s114
      %p116 = scmp.eq.s32.totalorder %s22, 0
      %p117 = por %p115, %p116
      %p118 = scmp.le.s32.totalorder 1, %s16
      %p119 = scmp.lt.s32.totalorder %s16, 6
      %p120 = pnand %p118, %p119
      %p121 = pneg %p120
      // Predicated region
      $region9: #{tpu_custom_call.1} parent=5 // pred_check
        _
      $region10: #{tpu_custom_call.1} parent=5 // pred_check_branch
        %123 = sbr.rel (%p120) target = $region12
      $region11: #{tpu_custom_call.1} parent=5 // pred_region
        %s124 = ssub.s32 %s16, 1
        // Predicated region
        $region13: #{tpu_custom_call.1} parent=11 // pred_check
          %p125 = pneg %p63
        $region14: #{tpu_custom_call.1} parent=11 // pred_check_branch
          %127 = sbr.rel (%p125) target = $region16
        $region15: #{tpu_custom_call.1} parent=11 // pred_region
          %s129 = ssub.s32 16384, 16384
          %130 = vsyncadd [#allocation6], %s129
          %s131 = sshll.u32 [#allocation5], 4
          %s132 = int_to_ptr.vmem [resolvable:$true] %s131
          %137 = dma.hbm_to_vmem [thread:$0]  %s1, 16384, %s132, [#allocation6], 256, 256, 16
        $region16: #{tpu_custom_call.1} parent=11 // pred_fallthru
          _
        // Predicated region
        $region17: #{tpu_custom_call.1} parent=11 // pred_check
          %p138 = pneg %p84
        $region18: #{tpu_custom_call.1} parent=11 // pred_check_branch
          %140 = sbr.rel (%p138) target = $region20
        $region19: #{tpu_custom_call.1} parent=11 // pred_region
          _
        $region20: #{tpu_custom_call.1} parent=11 // pred_fallthru
          _
      $region12: #{tpu_custom_call.1} parent=5 // pred_fallthru
        _
      %p141 = scmp.lt.s32.totalorder %s16, 5
      // Predicated region
      $region21: #{tpu_custom_call.1} parent=5 // pred_check
        %p142 = pneg %p141
      $region22: #{tpu_custom_call.1} parent=5 // pred_check_branch
        %144 = sbr.rel (%p142) target = $region24
      $region23: #{tpu_custom_call.1} parent=5 // pred_region
        // Predicated region
        $region25: #{tpu_custom_call.1} parent=23 // pred_check
          %p145 = pneg %p36
        $region26: #{tpu_custom_call.1} parent=23 // pred_check_branch
          %147 = sbr.rel (%p145) target = $region28
        $region27: #{tpu_custom_call.1} parent=23 // pred_region
          %s148 = sand.u32 %s26, 1
          %s149 = scalar_lea.sflag [#allocation3], %s148
          %s150 = sand.u32 %s26, 1
          %s151 = smul.addr %s150, 128
          %s152 = scalar_lea.vmem [#allocation2], %s151
          %s153 = smul.u32 8, %s16
          %s155 = ssub.s32 2048, 2048
          %156 = vsyncadd %s149, %s155
          %s157 = smul.addr %s153, 4
          %s158 = smul.addr %s157, 64
          %s159 = scalar_lea.hbm %s0, %s158
          %s160 = sshll.u32 %s152, 4
          %s161 = int_to_ptr.vmem [resolvable:$true] %s160
          %166 = dma.hbm_to_vmem [thread:$0]  %s159, 2048, %s161, %s149, 256, 256, 16
        $region28: #{tpu_custom_call.1} parent=23 // pred_fallthru
          _
      $region24: #{tpu_custom_call.1} parent=5 // pred_fallthru
        _
      %p167 = scmp.le.s32.totalorder 1, %s16
      %p168 = scmp.lt.s32.totalorder %s16, 6
      %p169 = pnand %p167, %p168
      %p170 = pneg %p169
      // Predicated region
      $region29: #{tpu_custom_call.1} parent=5 // pred_check
        _
      $region30: #{tpu_custom_call.1} parent=5 // pred_check_branch
        %172 = sbr.rel (%p169) target = $region32
      $region31: #{tpu_custom_call.1} parent=5 // pred_region
        %s173 = ssub.s32 %s16, 1
        %s174 = sand.u32 %s29, 1
        %s175 = scalar_lea.sflag [#allocation3], %s174
        %s176 = sand.u32 %s29, 1
        %s177 = smul.addr %s176, 128
        %s178 = scalar_lea.vmem [#allocation2], %s177
        // Predicated region
        $region33: #{tpu_custom_call.1} parent=31 // pred_check
          %p179 = pneg %p42
        $region34: #{tpu_custom_call.1} parent=31 // pred_check_branch
          %181 = sbr.rel (%p179) target = $region36
        $region35: #{tpu_custom_call.1} parent=31 // pred_region
          %182 = dma.done %s175, 2048
        $region36: #{tpu_custom_call.1} parent=31 // pred_fallthru
          _
        // Predicated region
        $region37: #{tpu_custom_call.1} parent=31 // pred_check
          %p183 = pneg %p63
        $region38: #{tpu_custom_call.1} parent=31 // pred_check_branch
          %185 = sbr.rel (%p183) target = $region40
        $region39: #{tpu_custom_call.1} parent=31 // pred_region
          %186 = dma.done [#allocation6], 16384
        $region40: #{tpu_custom_call.1} parent=31 // pred_fallthru
          _
        %s187 = sand.u32 %s29, 1
        %s188 = scalar_lea.sflag [#allocation3], %s187
        %s189 = sand.u32 %s29, 1
        %s190 = smul.addr %s189, 128
        %s191 = scalar_lea.vmem [#allocation2], %s190
        %p192 = pneg %p42
        %p193 = pneg %p39
        %p194 = pneg %p63
        %p195 = pneg %p60
        %p196 = pneg %p84
        %p197 = pneg %p81
        %p198 = pneg %p110
        %p199 = pneg %p107
        %s200 = sand.u32 %s97, 1
        %s201 = scalar_lea.sflag [#allocation4], %s200
        %s202 = sand.u32 %s97, 1
        %s203 = smul.addr %s202, 256
        %s204 = scalar_lea.vmem [#allocation7], %s203
        %s205 = smul.u32 8, %s21
        %s206 = smul.u32 8, %s21
        %v207 = vld [vmem:[%s178] sm:$0xff]
        %v208 = vld [vmem:[%s178 + $0x8] sm:$0xff]
        %v209 = vld [vmem:[%s178 + $0x10] sm:$0xff]
        %v210 = vld [vmem:[%s178 + $0x18] sm:$0xff]
        %v211 = vld [vmem:[%s178 + $0x20] sm:$0xff]
        %v212 = vld [vmem:[%s178 + $0x28] sm:$0xff]
        %v213 = vld [vmem:[%s178 + $0x30] sm:$0xff]
        %v214 = vld [vmem:[%s178 + $0x38] sm:$0xff]
        %v215 = vld [vmem:[%s178 + $0x40] sm:$0xff]
        %v216 = vld [vmem:[%s178 + $0x48] sm:$0xff]
        %v217 = vld [vmem:[%s178 + $0x50] sm:$0xff]
        %v218 = vld [vmem:[%s178 + $0x58] sm:$0xff]
        %v219 = vld [vmem:[%s178 + $0x60] sm:$0xff]
        %v220 = vld [vmem:[%s178 + $0x68] sm:$0xff]
        %v221 = vld [vmem:[%s178 + $0x70] sm:$0xff]
        %v222 = vld [vmem:[%s178 + $0x78] sm:$0xff]
        %v223 = vld [vmem:[#allocation5] sm:$0xff]
        %v224 = vld [vmem:[#allocation5 + $0x8] sm:$0xff]
        %v225 = vld [vmem:[#allocation5 + $0x10] sm:$0xff]
        %v226 = vld [vmem:[#allocation5 + $0x18] sm:$0xff]
        %v227 = vld [vmem:[#allocation5 + $0x20] sm:$0xff]
        %v228 = vld [vmem:[#allocation5 + $0x28] sm:$0xff]
        %v229 = vld [vmem:[#allocation5 + $0x30] sm:$0xff]
        %v230 = vld [vmem:[#allocation5 + $0x38] sm:$0xff]
        %v231 = vld [vmem:[#allocation5 + $0x40] sm:$0xff]
        %v232 = vld [vmem:[#allocation5 + $0x48] sm:$0xff]
        %v233 = vld [vmem:[#allocation5 + $0x50] sm:$0xff]
        %v234 = vld [vmem:[#allocation5 + $0x58] sm:$0xff]
        %v235 = vld [vmem:[#allocation5 + $0x60] sm:$0xff]
        %v236 = vld [vmem:[#allocation5 + $0x68] sm:$0xff]
        %v237 = vld [vmem:[#allocation5 + $0x70] sm:$0xff]
        %v238 = vld [vmem:[#allocation5 + $0x78] sm:$0xff]
        %v239 = vld [vmem:[#allocation5 + $0x80] sm:$0xff]
        %v240 = vld [vmem:[#allocation5 + $0x88] sm:$0xff]
        %v241 = vld [vmem:[#allocation5 + $0x90] sm:$0xff]
        %v242 = vld [vmem:[#allocation5 + $0x98] sm:$0xff]
        %v243 = vld [vmem:[#allocation5 + $0xa0] sm:$0xff]
        %v244 = vld [vmem:[#allocation5 + $0xa8] sm:$0xff]
        %v245 = vld [vmem:[#allocation5 + $0xb0] sm:$0xff]
        %v246 = vld [vmem:[#allocation5 + $0xb8] sm:$0xff]
        %v247 = vld [vmem:[#allocation5 + $0xc0] sm:$0xff]
        %v248 = vld [vmem:[#allocation5 + $0xc8] sm:$0xff]
        %v249 = vld [vmem:[#allocation5 + $0xd0] sm:$0xff]
        %v250 = vld [vmem:[#allocation5 + $0xd8] sm:$0xff]
        %v251 = vld [vmem:[#allocation5 + $0xe0] sm:$0xff]
        %v252 = vld [vmem:[#allocation5 + $0xe8] sm:$0xff]
        %v253 = vld [vmem:[#allocation5 + $0xf0] sm:$0xff]
        %v254 = vld [vmem:[#allocation5 + $0xf8] sm:$0xff]
        %v255 = vld [vmem:[#allocation5 + $0x100] sm:$0xff]
        %v256 = vld [vmem:[#allocation5 + $0x108] sm:$0xff]
        %v257 = vld [vmem:[#allocation5 + $0x110] sm:$0xff]
        %v258 = vld [vmem:[#allocation5 + $0x118] sm:$0xff]
        %v259 = vld [vmem:[#allocation5 + $0x120] sm:$0xff]
        %v260 = vld [vmem:[#allocation5 + $0x128] sm:$0xff]
        %v261 = vld [vmem:[#allocation5 + $0x130] sm:$0xff]
        %v262 = vld [vmem:[#allocation5 + $0x138] sm:$0xff]
        %v263 = vld [vmem:[#allocation5 + $0x140] sm:$0xff]
        %v264 = vld [vmem:[#allocation5 + $0x148] sm:$0xff]
        %v265 = vld [vmem:[#allocation5 + $0x150] sm:$0xff]
        %v266 = vld [vmem:[#allocation5 + $0x158] sm:$0xff]
        %v267 = vld [vmem:[#allocation5 + $0x160] sm:$0xff]
        %v268 = vld [vmem:[#allocation5 + $0x168] sm:$0xff]
        %v269 = vld [vmem:[#allocation5 + $0x170] sm:$0xff]
        %v270 = vld [vmem:[#allocation5 + $0x178] sm:$0xff]
        %v271 = vld [vmem:[#allocation5 + $0x180] sm:$0xff]
        %v272 = vld [vmem:[#allocation5 + $0x188] sm:$0xff]
        %v273 = vld [vmem:[#allocation5 + $0x190] sm:$0xff]
        %v274 = vld [vmem:[#allocation5 + $0x198] sm:$0xff]
        %v275 = vld [vmem:[#allocation5 + $0x1a0] sm:$0xff]
        %v276 = vld [vmem:[#allocation5 + $0x1a8] sm:$0xff]
        %v277 = vld [vmem:[#allocation5 + $0x1b0] sm:$0xff]
        %v278 = vld [vmem:[#allocation5 + $0x1b8] sm:$0xff]
        %v279 = vld [vmem:[#allocation5 + $0x1c0] sm:$0xff]
        %v280 = vld [vmem:[#allocation5 + $0x1c8] sm:$0xff]
        %v281 = vld [vmem:[#allocation5 + $0x1d0] sm:$0xff]
        %v282 = vld [vmem:[#allocation5 + $0x1d8] sm:$0xff]
        %v283 = vld [vmem:[#allocation5 + $0x1e0] sm:$0xff]
        %v284 = vld [vmem:[#allocation5 + $0x1e8] sm:$0xff]
        %v285 = vld [vmem:[#allocation5 + $0x1f0] sm:$0xff]
        %v286 = vld [vmem:[#allocation5 + $0x1f8] sm:$0xff]
        %v287 = vld [vmem:[#allocation5 + $0x200] sm:$0xff]
        %v288 = vld [vmem:[#allocation5 + $0x208] sm:$0xff]
        %v289 = vld [vmem:[#allocation5 + $0x210] sm:$0xff]
        %v290 = vld [vmem:[#allocation5 + $0x218] sm:$0xff]
        %v291 = vld [vmem:[#allocation5 + $0x220] sm:$0xff]
        %v292 = vld [vmem:[#allocation5 + $0x228] sm:$0xff]
        %v293 = vld [vmem:[#allocation5 + $0x230] sm:$0xff]
        %v294 = vld [vmem:[#allocation5 + $0x238] sm:$0xff]
        %v295 = vld [vmem:[#allocation5 + $0x240] sm:$0xff]
        %v296 = vld [vmem:[#allocation5 + $0x248] sm:$0xff]
        %v297 = vld [vmem:[#allocation5 + $0x250] sm:$0xff]
        %v298 = vld [vmem:[#allocation5 + $0x258] sm:$0xff]
        %v299 = vld [vmem:[#allocation5 + $0x260] sm:$0xff]
        %v300 = vld [vmem:[#allocation5 + $0x268] sm:$0xff]
        %v301 = vld [vmem:[#allocation5 + $0x270] sm:$0xff]
        %v302 = vld [vmem:[#allocation5 + $0x278] sm:$0xff]
        %v303 = vld [vmem:[#allocation5 + $0x280] sm:$0xff]
        %v304 = vld [vmem:[#allocation5 + $0x288] sm:$0xff]
        %v305 = vld [vmem:[#allocation5 + $0x290] sm:$0xff]
        %v306 = vld [vmem:[#allocation5 + $0x298] sm:$0xff]
        %v307 = vld [vmem:[#allocation5 + $0x2a0] sm:$0xff]
        %v308 = vld [vmem:[#allocation5 + $0x2a8] sm:$0xff]
        %v309 = vld [vmem:[#allocation5 + $0x2b0] sm:$0xff]
        %v310 = vld [vmem:[#allocation5 + $0x2b8] sm:$0xff]
        %v311 = vld [vmem:[#allocation5 + $0x2c0] sm:$0xff]
        %v312 = vld [vmem:[#allocation5 + $0x2c8] sm:$0xff]
        %v313 = vld [vmem:[#allocation5 + $0x2d0] sm:$0xff]
        %v314 = vld [vmem:[#allocation5 + $0x2d8] sm:$0xff]
        %v315 = vld [vmem:[#allocation5 + $0x2e0] sm:$0xff]
        %v316 = vld [vmem:[#allocation5 + $0x2e8] sm:$0xff]
        %v317 = vld [vmem:[#allocation5 + $0x2f0] sm:$0xff]
        %v318 = vld [vmem:[#allocation5 + $0x2f8] sm:$0xff]
        %v319 = vld [vmem:[#allocation5 + $0x300] sm:$0xff]
        %v320 = vld [vmem:[#allocation5 + $0x308] sm:$0xff]
        %v321 = vld [vmem:[#allocation5 + $0x310] sm:$0xff]
        %v322 = vld [vmem:[#allocation5 + $0x318] sm:$0xff]
        %v323 = vld [vmem:[#allocation5 + $0x320] sm:$0xff]
        %v324 = vld [vmem:[#allocation5 + $0x328] sm:$0xff]
        %v325 = vld [vmem:[#allocation5 + $0x330] sm:$0xff]
        %v326 = vld [vmem:[#allocation5 + $0x338] sm:$0xff]
        %v327 = vld [vmem:[#allocation5 + $0x340] sm:$0xff]
        %v328 = vld [vmem:[#allocation5 + $0x348] sm:$0xff]
        %v329 = vld [vmem:[#allocation5 + $0x350] sm:$0xff]
        %v330 = vld [vmem:[#allocation5 + $0x358] sm:$0xff]
        %v331 = vld [vmem:[#allocation5 + $0x360] sm:$0xff]
        %v332 = vld [vmem:[#allocation5 + $0x368] sm:$0xff]
        %v333 = vld [vmem:[#allocation5 + $0x370] sm:$0xff]
        %v334 = vld [vmem:[#allocation5 + $0x378] sm:$0xff]
        %v335 = vld [vmem:[#allocation5 + $0x380] sm:$0xff]
        %v336 = vld [vmem:[#allocation5 + $0x388] sm:$0xff]
        %v337 = vld [vmem:[#allocation5 + $0x390] sm:$0xff]
        %v338 = vld [vmem:[#allocation5 + $0x398] sm:$0xff]
        %v339 = vld [vmem:[#allocation5 + $0x3a0] sm:$0xff]
        %v340 = vld [vmem:[#allocation5 + $0x3a8] sm:$0xff]
        %v341 = vld [vmem:[#allocation5 + $0x3b0] sm:$0xff]
        %v342 = vld [vmem:[#allocation5 + $0x3b8] sm:$0xff]
        %v343 = vld [vmem:[#allocation5 + $0x3c0] sm:$0xff]
        %v344 = vld [vmem:[#allocation5 + $0x3c8] sm:$0xff]
        %v345 = vld [vmem:[#allocation5 + $0x3d0] sm:$0xff]
        %v346 = vld [vmem:[#allocation5 + $0x3d8] sm:$0xff]
        %v347 = vld [vmem:[#allocation5 + $0x3e0] sm:$0xff]
        %v348 = vld [vmem:[#allocation5 + $0x3e8] sm:$0xff]
        %v349 = vld [vmem:[#allocation5 + $0x3f0] sm:$0xff]
        %v350 = vld [vmem:[#allocation5 + $0x3f8] sm:$0xff]
        %v351 = vld [vmem:[%s2] sm:$0xf]
        %v353 = vlaneseq
        %v354 = vshrl.u32 %v353, 7
        %v355 = vsub.s32 0, %v354
        %v356 = vrot.slane %v351, %v355
        %v357 = vlaneseq
        %v358 = vshrl.u32 %v357, 7
        %v359 = vsub.s32 1, %v358
        %v360 = vrot.slane %v351, %v359
        %v361 = vlaneseq
        %v362 = vshrl.u32 %v361, 7
        %v363 = vsub.s32 2, %v362
        %v364 = vrot.slane %v351, %v363
        %v365 = vlaneseq
        %v366 = vshrl.u32 %v365, 7
        %v367 = vsub.s32 3, %v366
        %v368 = vrot.slane %v351, %v367
        %v389 = vunpack.c.l.b16 %v207
        %v390 = vunpack.c.h.b16 %v207
        %v391 = vunpack.c.l.b16 %v208
        %v392 = vunpack.c.h.b16 %v208
        %v393 = vunpack.c.l.b16 %v209
        %v394 = vunpack.c.h.b16 %v209
        %v395 = vunpack.c.l.b16 %v210
        %v396 = vunpack.c.h.b16 %v210
        %v397 = vunpack.c.l.b16 %v211
        %v398 = vunpack.c.h.b16 %v211
        %v399 = vunpack.c.l.b16 %v212
        %v400 = vunpack.c.h.b16 %v212
        %v401 = vunpack.c.l.b16 %v213
        %v402 = vunpack.c.h.b16 %v213
        %v403 = vunpack.c.l.b16 %v214
        %v404 = vunpack.c.h.b16 %v214
        %v405 = vunpack.c.l.b16 %v215
        %v406 = vunpack.c.h.b16 %v215
        %v407 = vunpack.c.l.b16 %v216
        %v408 = vunpack.c.h.b16 %v216
        %v409 = vunpack.c.l.b16 %v217
        %v410 = vunpack.c.h.b16 %v217
        %v411 = vunpack.c.l.b16 %v218
        %v412 = vunpack.c.h.b16 %v218
        %v413 = vunpack.c.l.b16 %v219
        %v414 = vunpack.c.h.b16 %v219
        %v415 = vunpack.c.l.b16 %v220
        %v416 = vunpack.c.h.b16 %v220
        %v417 = vunpack.c.l.b16 %v221
        %v418 = vunpack.c.h.b16 %v221
        %v419 = vunpack.c.l.b16 %v222
        %v420 = vunpack.c.h.b16 %v222
        %v421 = vpack.c.b16 %v393, %v389
        %v422 = vpack.c.b16 %v394, %v390
        %v423 = vpack.c.b16 %v395, %v391
        %v424 = vpack.c.b16 %v396, %v392
        %v425 = vpack.c.b16 %v401, %v397
        %v426 = vpack.c.b16 %v402, %v398
        %v427 = vpack.c.b16 %v403, %v399
        %v428 = vpack.c.b16 %v404, %v400
        %v429 = vpack.c.b16 %v409, %v405
        %v430 = vpack.c.b16 %v410, %v406
        %v431 = vpack.c.b16 %v411, %v407
        %v432 = vpack.c.b16 %v412, %v408
        %v433 = vpack.c.b16 %v417, %v413
        %v434 = vpack.c.b16 %v418, %v414
        %v435 = vpack.c.b16 %v419, %v415
        %v436 = vpack.c.b16 %v420, %v416
        %v581 = vunpack.c.l.b16 %v223
        %v582 = vunpack.c.h.b16 %v223
        %v583 = vunpack.c.l.b16 %v224
        %v584 = vunpack.c.h.b16 %v224
        %v585 = vunpack.c.l.b16 %v225
        %v586 = vunpack.c.h.b16 %v225
        %v587 = vunpack.c.l.b16 %v226
        %v588 = vunpack.c.h.b16 %v226
        %v589 = vunpack.c.l.b16 %v227
        %v590 = vunpack.c.h.b16 %v227
        %v591 = vunpack.c.l.b16 %v228
        %v592 = vunpack.c.h.b16 %v228
        %v593 = vunpack.c.l.b16 %v229
        %v594 = vunpack.c.h.b16 %v229
        %v595 = vunpack.c.l.b16 %v230
        %v596 = vunpack.c.h.b16 %v230
        %v597 = vunpack.c.l.b16 %v231
        %v598 = vunpack.c.h.b16 %v231
        %v599 = vunpack.c.l.b16 %v232
        %v600 = vunpack.c.h.b16 %v232
        %v601 = vunpack.c.l.b16 %v233
        %v602 = vunpack.c.h.b16 %v233
        %v603 = vunpack.c.l.b16 %v234
        %v604 = vunpack.c.h.b16 %v234
        %v605 = vunpack.c.l.b16 %v235
        %v606 = vunpack.c.h.b16 %v235
        %v607 = vunpack.c.l.b16 %v236
        %v608 = vunpack.c.h.b16 %v236
        %v609 = vunpack.c.l.b16 %v237
        %v610 = vunpack.c.h.b16 %v237
        %v611 = vunpack.c.l.b16 %v238
        %v612 = vunpack.c.h.b16 %v238
        %v613 = vunpack.c.l.b16 %v239
        %v614 = vunpack.c.h.b16 %v239
        %v615 = vunpack.c.l.b16 %v240
        %v616 = vunpack.c.h.b16 %v240
        %v617 = vunpack.c.l.b16 %v241
        %v618 = vunpack.c.h.b16 %v241
        %v619 = vunpack.c.l.b16 %v242
        %v620 = vunpack.c.h.b16 %v242
        %v621 = vunpack.c.l.b16 %v243
        %v622 = vunpack.c.h.b16 %v243
        %v623 = vunpack.c.l.b16 %v244
        %v624 = vunpack.c.h.b16 %v244
        %v625 = vunpack.c.l.b16 %v245
        %v626 = vunpack.c.h.b16 %v245
        %v627 = vunpack.c.l.b16 %v246
        %v628 = vunpack.c.h.b16 %v246
        %v629 = vunpack.c.l.b16 %v247
        %v630 = vunpack.c.h.b16 %v247
        %v631 = vunpack.c.l.b16 %v248
        %v632 = vunpack.c.h.b16 %v248
        %v633 = vunpack.c.l.b16 %v249
        %v634 = vunpack.c.h.b16 %v249
        %v635 = vunpack.c.l.b16 %v250
        %v636 = vunpack.c.h.b16 %v250
        %v637 = vunpack.c.l.b16 %v251
        %v638 = vunpack.c.h.b16 %v251
        %v639 = vunpack.c.l.b16 %v252
        %v640 = vunpack.c.h.b16 %v252
        %v641 = vunpack.c.l.b16 %v253
        %v642 = vunpack.c.h.b16 %v253
        %v643 = vunpack.c.l.b16 %v254
        %v644 = vunpack.c.h.b16 %v254
        %v645 = vunpack.c.l.b16 %v255
        %v646 = vunpack.c.h.b16 %v255
        %v647 = vunpack.c.l.b16 %v256
        %v648 = vunpack.c.h.b16 %v256
        %v649 = vunpack.c.l.b16 %v257
        %v650 = vunpack.c.h.b16 %v257
        %v651 = vunpack.c.l.b16 %v258
        %v652 = vunpack.c.h.b16 %v258
        %v653 = vunpack.c.l.b16 %v259
        %v654 = vunpack.c.h.b16 %v259
        %v655 = vunpack.c.l.b16 %v260
        %v656 = vunpack.c.h.b16 %v260
        %v657 = vunpack.c.l.b16 %v261
        %v658 = vunpack.c.h.b16 %v261
        %v659 = vunpack.c.l.b16 %v262
        %v660 = vunpack.c.h.b16 %v262
        %v661 = vunpack.c.l.b16 %v263
        %v662 = vunpack.c.h.b16 %v263
        %v663 = vunpack.c.l.b16 %v264
        %v664 = vunpack.c.h.b16 %v264
        %v665 = vunpack.c.l.b16 %v265
        %v666 = vunpack.c.h.b16 %v265
        %v667 = vunpack.c.l.b16 %v266
        %v668 = vunpack.c.h.b16 %v266
        %v669 = vunpack.c.l.b16 %v267
        %v670 = vunpack.c.h.b16 %v267
        %v671 = vunpack.c.l.b16 %v268
        %v672 = vunpack.c.h.b16 %v268
        %v673 = vunpack.c.l.b16 %v269
        %v674 = vunpack.c.h.b16 %v269
        %v675 = vunpack.c.l.b16 %v270
        %v676 = vunpack.c.h.b16 %v270
        %v677 = vunpack.c.l.b16 %v271
        %v678 = vunpack.c.h.b16 %v271
        %v679 = vunpack.c.l.b16 %v272
        %v680 = vunpack.c.h.b16 %v272
        %v681 = vunpack.c.l.b16 %v273
        %v682 = vunpack.c.h.b16 %v273
        %v683 = vunpack.c.l.b16 %v274
        %v684 = vunpack.c.h.b16 %v274
        %v685 = vunpack.c.l.b16 %v275
        %v686 = vunpack.c.h.b16 %v275
        %v687 = vunpack.c.l.b16 %v276
        %v688 = vunpack.c.h.b16 %v276
        %v689 = vunpack.c.l.b16 %v277
        %v690 = vunpack.c.h.b16 %v277
        %v691 = vunpack.c.l.b16 %v278
        %v692 = vunpack.c.h.b16 %v278
        %v693 = vunpack.c.l.b16 %v279
        %v694 = vunpack.c.h.b16 %v279
        %v695 = vunpack.c.l.b16 %v280
        %v696 = vunpack.c.h.b16 %v280
        %v697 = vunpack.c.l.b16 %v281
        %v698 = vunpack.c.h.b16 %v281
        %v699 = vunpack.c.l.b16 %v282
        %v700 = vunpack.c.h.b16 %v282
        %v701 = vunpack.c.l.b16 %v283
        %v702 = vunpack.c.h.b16 %v283
        %v703 = vunpack.c.l.b16 %v284
        %v704 = vunpack.c.h.b16 %v284
        %v705 = vunpack.c.l.b16 %v285
        %v706 = vunpack.c.h.b16 %v285
        %v707 = vunpack.c.l.b16 %v286
        %v708 = vunpack.c.h.b16 %v286
        %v709 = vunpack.c.l.b16 %v287
        %v710 = vunpack.c.h.b16 %v287
        %v711 = vunpack.c.l.b16 %v288
        %v712 = vunpack.c.h.b16 %v288
        %v713 = vunpack.c.l.b16 %v289
        %v714 = vunpack.c.h.b16 %v289
        %v715 = vunpack.c.l.b16 %v290
        %v716 = vunpack.c.h.b16 %v290
        %v717 = vunpack.c.l.b16 %v291
        %v718 = vunpack.c.h.b16 %v291
        %v719 = vunpack.c.l.b16 %v292
        %v720 = vunpack.c.h.b16 %v292
        %v721 = vunpack.c.l.b16 %v293
        %v722 = vunpack.c.h.b16 %v293
        %v723 = vunpack.c.l.b16 %v294
        %v724 = vunpack.c.h.b16 %v294
        %v725 = vunpack.c.l.b16 %v295
        %v726 = vunpack.c.h.b16 %v295
        %v727 = vunpack.c.l.b16 %v296
        %v728 = vunpack.c.h.b16 %v296
        %v729 = vunpack.c.l.b16 %v297
        %v730 = vunpack.c.h.b16 %v297
        %v731 = vunpack.c.l.b16 %v298
        %v732 = vunpack.c.h.b16 %v298
        %v733 = vunpack.c.l.b16 %v299
        %v734 = vunpack.c.h.b16 %v299
        %v735 = vunpack.c.l.b16 %v300
        %v736 = vunpack.c.h.b16 %v300
        %v737 = vunpack.c.l.b16 %v301
        %v738 = vunpack.c.h.b16 %v301
        %v739 = vunpack.c.l.b16 %v302
        %v740 = vunpack.c.h.b16 %v302
        %v741 = vunpack.c.l.b16 %v303
        %v742 = vunpack.c.h.b16 %v303
        %v743 = vunpack.c.l.b16 %v304
        %v744 = vunpack.c.h.b16 %v304
        %v745 = vunpack.c.l.b16 %v305
        %v746 = vunpack.c.h.b16 %v305
        %v747 = vunpack.c.l.b16 %v306
        %v748 = vunpack.c.h.b16 %v306
        %v749 = vunpack.c.l.b16 %v307
        %v750 = vunpack.c.h.b16 %v307
        %v751 = vunpack.c.l.b16 %v308
        %v752 = vunpack.c.h.b16 %v308
        %v753 = vunpack.c.l.b16 %v309
        %v754 = vunpack.c.h.b16 %v309
        %v755 = vunpack.c.l.b16 %v310
        %v756 = vunpack.c.h.b16 %v310
        %v757 = vunpack.c.l.b16 %v311
        %v758 = vunpack.c.h.b16 %v311
        %v759 = vunpack.c.l.b16 %v312
        %v760 = vunpack.c.h.b16 %v312
        %v761 = vunpack.c.l.b16 %v313
        %v762 = vunpack.c.h.b16 %v313
        %v763 = vunpack.c.l.b16 %v314
        %v764 = vunpack.c.h.b16 %v314
        %v765 = vunpack.c.l.b16 %v315
        %v766 = vunpack.c.h.b16 %v315
        %v767 = vunpack.c.l.b16 %v316
        %v768 = vunpack.c.h.b16 %v316
        %v769 = vunpack.c.l.b16 %v317
        %v770 = vunpack.c.h.b16 %v317
        %v771 = vunpack.c.l.b16 %v318
        %v772 = vunpack.c.h.b16 %v318
        %v773 = vunpack.c.l.b16 %v319
        %v774 = vunpack.c.h.b16 %v319
        %v775 = vunpack.c.l.b16 %v320
        %v776 = vunpack.c.h.b16 %v320
        %v777 = vunpack.c.l.b16 %v321
        %v778 = vunpack.c.h.b16 %v321
        %v779 = vunpack.c.l.b16 %v322
        %v780 = vunpack.c.h.b16 %v322
        %v781 = vunpack.c.l.b16 %v323
        %v782 = vunpack.c.h.b16 %v323
        %v783 = vunpack.c.l.b16 %v324
        %v784 = vunpack.c.h.b16 %v324
        %v785 = vunpack.c.l.b16 %v325
        %v786 = vunpack.c.h.b16 %v325
        %v787 = vunpack.c.l.b16 %v326
        %v788 = vunpack.c.h.b16 %v326
        %v789 = vunpack.c.l.b16 %v327
        %v790 = vunpack.c.h.b16 %v327
        %v791 = vunpack.c.l.b16 %v328
        %v792 = vunpack.c.h.b16 %v328
        %v793 = vunpack.c.l.b16 %v329
        %v794 = vunpack.c.h.b16 %v329
        %v795 = vunpack.c.l.b16 %v330
        %v796 = vunpack.c.h.b16 %v330
        %v797 = vunpack.c.l.b16 %v331
        %v798 = vunpack.c.h.b16 %v331
        %v799 = vunpack.c.l.b16 %v332
        %v800 = vunpack.c.h.b16 %v332
        %v801 = vunpack.c.l.b16 %v333
        %v802 = vunpack.c.h.b16 %v333
        %v803 = vunpack.c.l.b16 %v334
        %v804 = vunpack.c.h.b16 %v334
        %v805 = vunpack.c.l.b16 %v335
        %v806 = vunpack.c.h.b16 %v335
        %v807 = vunpack.c.l.b16 %v336
        %v808 = vunpack.c.h.b16 %v336
        %v809 = vunpack.c.l.b16 %v337
        %v810 = vunpack.c.h.b16 %v337
        %v811 = vunpack.c.l.b16 %v338
        %v812 = vunpack.c.h.b16 %v338
        %v813 = vunpack.c.l.b16 %v339
        %v814 = vunpack.c.h.b16 %v339
        %v815 = vunpack.c.l.b16 %v340
        %v816 = vunpack.c.h.b16 %v340
        %v817 = vunpack.c.l.b16 %v341
        %v818 = vunpack.c.h.b16 %v341
        %v819 = vunpack.c.l.b16 %v342
        %v820 = vunpack.c.h.b16 %v342
        %v821 = vunpack.c.l.b16 %v343
        %v822 = vunpack.c.h.b16 %v343
        %v823 = vunpack.c.l.b16 %v344
        %v824 = vunpack.c.h.b16 %v344
        %v825 = vunpack.c.l.b16 %v345
        %v826 = vunpack.c.h.b16 %v345
        %v827 = vunpack.c.l.b16 %v346
        %v828 = vunpack.c.h.b16 %v346
        %v829 = vunpack.c.l.b16 %v347
        %v830 = vunpack.c.h.b16 %v347
        %v831 = vunpack.c.l.b16 %v348
        %v832 = vunpack.c.h.b16 %v348
        %v833 = vunpack.c.l.b16 %v349
        %v834 = vunpack.c.h.b16 %v349
        %v835 = vunpack.c.l.b16 %v350
        %v836 = vunpack.c.h.b16 %v350
        %v837 = vpack.c.b16 %v585, %v581
        %v838 = vpack.c.b16 %v586, %v582
        %v839 = vpack.c.b16 %v587, %v583
        %v840 = vpack.c.b16 %v588, %v584
        %v841 = vpack.c.b16 %v593, %v589
        %v842 = vpack.c.b16 %v594, %v590
        %v843 = vpack.c.b16 %v595, %v591
        %v844 = vpack.c.b16 %v596, %v592
        %v845 = vpack.c.b16 %v601, %v597
        %v846 = vpack.c.b16 %v602, %v598
        %v847 = vpack.c.b16 %v603, %v599
        %v848 = vpack.c.b16 %v604, %v600
        %v849 = vpack.c.b16 %v609, %v605
        %v850 = vpack.c.b16 %v610, %v606
        %v851 = vpack.c.b16 %v611, %v607
        %v852 = vpack.c.b16 %v612, %v608
        %v853 = vpack.c.b16 %v617, %v613
        %v854 = vpack.c.b16 %v618, %v614
        %v855 = vpack.c.b16 %v619, %v615
        %v856 = vpack.c.b16 %v620, %v616
        %v857 = vpack.c.b16 %v625, %v621
        %v858 = vpack.c.b16 %v626, %v622
        %v859 = vpack.c.b16 %v627, %v623
        %v860 = vpack.c.b16 %v628, %v624
        %v861 = vpack.c.b16 %v633, %v629
        %v862 = vpack.c.b16 %v634, %v630
        %v863 = vpack.c.b16 %v635, %v631
        %v864 = vpack.c.b16 %v636, %v632
        %v865 = vpack.c.b16 %v641, %v637
        %v866 = vpack.c.b16 %v642, %v638
        %v867 = vpack.c.b16 %v643, %v639
        %v868 = vpack.c.b16 %v644, %v640
        %v869 = vpack.c.b16 %v649, %v645
        %v870 = vpack.c.b16 %v650, %v646
        %v871 = vpack.c.b16 %v651, %v647
        %v872 = vpack.c.b16 %v652, %v648
        %v873 = vpack.c.b16 %v657, %v653
        %v874 = vpack.c.b16 %v658, %v654
        %v875 = vpack.c.b16 %v659, %v655
        %v876 = vpack.c.b16 %v660, %v656
        %v877 = vpack.c.b16 %v665, %v661
        %v878 = vpack.c.b16 %v666, %v662
        %v879 = vpack.c.b16 %v667, %v663
        %v880 = vpack.c.b16 %v668, %v664
        %v881 = vpack.c.b16 %v673, %v669
        %v882 = vpack.c.b16 %v674, %v670
        %v883 = vpack.c.b16 %v675, %v671
        %v884 = vpack.c.b16 %v676, %v672
        %v885 = vpack.c.b16 %v681, %v677
        %v886 = vpack.c.b16 %v682, %v678
        %v887 = vpack.c.b16 %v683, %v679
        %v888 = vpack.c.b16 %v684, %v680
        %v889 = vpack.c.b16 %v689, %v685
        %v890 = vpack.c.b16 %v690, %v686
        %v891 = vpack.c.b16 %v691, %v687
        %v892 = vpack.c.b16 %v692, %v688
        %v893 = vpack.c.b16 %v697, %v693
        %v894 = vpack.c.b16 %v698, %v694
        %v895 = vpack.c.b16 %v699, %v695
        %v896 = vpack.c.b16 %v700, %v696
        %v897 = vpack.c.b16 %v705, %v701
        %v898 = vpack.c.b16 %v706, %v702
        %v899 = vpack.c.b16 %v707, %v703
        %v900 = vpack.c.b16 %v708, %v704
        %v901 = vpack.c.b16 %v713, %v709
        %v902 = vpack.c.b16 %v714, %v710
        %v903 = vpack.c.b16 %v715, %v711
        %v904 = vpack.c.b16 %v716, %v712
        %v905 = vpack.c.b16 %v721, %v717
        %v906 = vpack.c.b16 %v722, %v718
        %v907 = vpack.c.b16 %v723, %v719
        %v908 = vpack.c.b16 %v724, %v720
        %v909 = vpack.c.b16 %v729, %v725
        %v910 = vpack.c.b16 %v730, %v726
        %v911 = vpack.c.b16 %v731, %v727
        %v912 = vpack.c.b16 %v732, %v728
        %v913 = vpack.c.b16 %v737, %v733
        %v914 = vpack.c.b16 %v738, %v734
        %v915 = vpack.c.b16 %v739, %v735
        %v916 = vpack.c.b16 %v740, %v736
        %v917 = vpack.c.b16 %v745, %v741
        %v918 = vpack.c.b16 %v746, %v742
        %v919 = vpack.c.b16 %v747, %v743
        %v920 = vpack.c.b16 %v748, %v744
        %v921 = vpack.c.b16 %v753, %v749
        %v922 = vpack.c.b16 %v754, %v750
        %v923 = vpack.c.b16 %v755, %v751
        %v924 = vpack.c.b16 %v756, %v752
        %v925 = vpack.c.b16 %v761, %v757
        %v926 = vpack.c.b16 %v762, %v758
        %v927 = vpack.c.b16 %v763, %v759
        %v928 = vpack.c.b16 %v764, %v760
        %v929 = vpack.c.b16 %v769, %v765
        %v930 = vpack.c.b16 %v770, %v766
        %v931 = vpack.c.b16 %v771, %v767
        %v932 = vpack.c.b16 %v772, %v768
        %v933 = vpack.c.b16 %v777, %v773
        %v934 = vpack.c.b16 %v778, %v774
        %v935 = vpack.c.b16 %v779, %v775
        %v936 = vpack.c.b16 %v780, %v776
        %v937 = vpack.c.b16 %v785, %v781
        %v938 = vpack.c.b16 %v786, %v782
        %v939 = vpack.c.b16 %v787, %v783
        %v940 = vpack.c.b16 %v788, %v784
        %v941 = vpack.c.b16 %v793, %v789
        %v942 = vpack.c.b16 %v794, %v790
        %v943 = vpack.c.b16 %v795, %v791
        %v944 = vpack.c.b16 %v796, %v792
        %v945 = vpack.c.b16 %v801, %v797
        %v946 = vpack.c.b16 %v802, %v798
        %v947 = vpack.c.b16 %v803, %v799
        %v948 = vpack.c.b16 %v804, %v800
        %v949 = vpack.c.b16 %v809, %v805
        %v950 = vpack.c.b16 %v810, %v806
        %v951 = vpack.c.b16 %v811, %v807
        %v952 = vpack.c.b16 %v812, %v808
        %v953 = vpack.c.b16 %v817, %v813
        %v954 = vpack.c.b16 %v818, %v814
        %v955 = vpack.c.b16 %v819, %v815
        %v956 = vpack.c.b16 %v820, %v816
        %v957 = vpack.c.b16 %v825, %v821
        %v958 = vpack.c.b16 %v826, %v822
        %v959 = vpack.c.b16 %v827, %v823
        %v960 = vpack.c.b16 %v828, %v824
        %v961 = vpack.c.b16 %v833, %v829
        %v962 = vpack.c.b16 %v834, %v830
        %v963 = vpack.c.b16 %v835, %v831
        %v964 = vpack.c.b16 %v836, %v832
        %1093 = vmatprep.subr.bf16.mxu0 %v838
        %1094 = vmatpush1.bf16.msra.mxu0 %v837
        %1095 = vmatprep.subr.bf16.mxu0 %v842
        %1096 = vmatpush1.bf16.msra.mxu0 %v841
        %1097 = vmatprep.subr.bf16.mxu0 %v846
        %1098 = vmatpush1.bf16.msra.mxu0 %v845
        %1099 = vmatprep.subr.bf16.mxu0 %v850
        %1100 = vmatpush1.bf16.msra.mxu0 %v849
        %1101 = vmatprep.subr.bf16.mxu0 %v854
        %1102 = vmatpush1.bf16.msra.mxu0 %v853
        %1103 = vmatprep.subr.bf16.mxu0 %v858
        %1104 = vmatpush1.bf16.msra.mxu0 %v857
        %1105 = vmatprep.subr.bf16.mxu0 %v862
        %1106 = vmatpush1.bf16.msra.mxu0 %v861
        %1107 = vmatprep.subr.bf16.mxu0 %v866
        %1108 = vmatpush1.bf16.msra.mxu0 %v865
        %1109 = vmatprep.subr.bf16.mxu0 %v870
        %1110 = vmatpush1.bf16.msra.mxu0 %v869
        %1111 = vmatprep.subr.bf16.mxu0 %v874
        %1112 = vmatpush1.bf16.msra.mxu0 %v873
        %1113 = vmatprep.subr.bf16.mxu0 %v878
        %1114 = vmatpush1.bf16.msra.mxu0 %v877
        %1115 = vmatprep.subr.bf16.mxu0 %v882
        %1116 = vmatpush1.bf16.msra.mxu0 %v881
        %1117 = vmatprep.subr.bf16.mxu0 %v886
        %1118 = vmatpush1.bf16.msra.mxu0 %v885
        %1119 = vmatprep.subr.bf16.mxu0 %v890
        %1120 = vmatpush1.bf16.msra.mxu0 %v889
        %1121 = vmatprep.subr.bf16.mxu0 %v894
        %1122 = vmatpush1.bf16.msra.mxu0 %v893
        %1123 = vmatprep.subr.bf16.mxu0 %v898
        %1124 = vmatpush1.bf16.msra.mxu0 %v897
        %1125 = vmatprep.mubr.bf16.mxu0 %v422
        %1126 = vmatmul.mubr.bf16.gmra.mrb[0].mxu0 %v421
        %v1127 = vpop.f32.mrb[0].mxu0
        %v1128 = vadd.f32 %v356, %v1127
        %v1129 = vpop.f32.mrb[0].mxu0
        %v1130 = vadd.f32 %v360, %v1129
        %v1131 = vpop.f32.mrb[0].mxu0
        %v1132 = vadd.f32 %v356, %v1131
        %v1133 = vpop.f32.mrb[0].mxu0
        %v1134 = vadd.f32 %v360, %v1133
        %1135 = vmatprep.mubr.bf16.mxu0 %v426
        %1136 = vmatmul.mubr.bf16.gmra.mrb[0].mxu0 %v425
        %v1137 = vpop.f32.mrb[0].mxu0
        %v1138 = vadd.f32 %v356, %v1137
        %v1139 = vpop.f32.mrb[0].mxu0
        %v1140 = vadd.f32 %v360, %v1139
        %v1141 = vpop.f32.mrb[0].mxu0
        %v1142 = vadd.f32 %v356, %v1141
        %v1143 = vpop.f32.mrb[0].mxu0
        %v1144 = vadd.f32 %v360, %v1143
        %1145 = vmatprep.mubr.bf16.mxu0 %v430
        %1146 = vmatmul.mubr.bf16.gmra.mrb[0].mxu0 %v429
        %v1147 = vpop.f32.mrb[0].mxu0
        %v1148 = vadd.f32 %v356, %v1147
        %v1149 = vpop.f32.mrb[0].mxu0
        %v1150 = vadd.f32 %v360, %v1149
        %v1151 = vpop.f32.mrb[0].mxu0
        %v1152 = vadd.f32 %v356, %v1151
        %v1153 = vpop.f32.mrb[0].mxu0
        %v1154 = vadd.f32 %v360, %v1153
        %1155 = vmatprep.mubr.bf16.mxu0 %v434
        %1156 = vmatmul.mubr.bf16.gmra.mrb[0].mxu0 %v433
        %v1157 = vpop.f32.mrb[0].mxu0
        %v1158 = vadd.f32 %v356, %v1157
        %v1159 = vpop.f32.mrb[0].mxu0
        %v1160 = vadd.f32 %v360, %v1159
        %v1161 = vpop.f32.mrb[0].mxu0
        %v1162 = vadd.f32 %v356, %v1161
        %v1163 = vpop.f32.mrb[0].mxu0
        %v1164 = vadd.f32 %v360, %v1163
        %1165 = vdwg.mxu0
        %1166 = vmatprep.subr.bf16.mxu0 %v902
        %1167 = vmatpush1.bf16.msra.mxu0 %v901
        %1168 = vmatprep.subr.bf16.mxu0 %v906
        %1169 = vmatpush1.bf16.msra.mxu0 %v905
        %1170 = vmatprep.subr.bf16.mxu0 %v910
        %1171 = vmatpush1.bf16.msra.mxu0 %v909
        %1172 = vmatprep.subr.bf16.mxu0 %v914
        %1173 = vmatpush1.bf16.msra.mxu0 %v913
        %1174 = vmatprep.subr.bf16.mxu0 %v918
        %1175 = vmatpush1.bf16.msra.mxu0 %v917
        %1176 = vmatprep.subr.bf16.mxu0 %v922
        %1177 = vmatpush1.bf16.msra.mxu0 %v921
        %1178 = vmatprep.subr.bf16.mxu0 %v926
        %1179 = vmatpush1.bf16.msra.mxu0 %v925
        %1180 = vmatprep.subr.bf16.mxu0 %v930
        %1181 = vmatpush1.bf16.msra.mxu0 %v929
        %1182 = vmatprep.subr.bf16.mxu0 %v934
        %1183 = vmatpush1.bf16.msra.mxu0 %v933
        %1184 = vmatprep.subr.bf16.mxu0 %v938
        %1185 = vmatpush1.bf16.msra.mxu0 %v937
        %1186 = vmatprep.subr.bf16.mxu0 %v942
        %1187 = vmatpush1.bf16.msra.mxu0 %v941
        %1188 = vmatprep.subr.bf16.mxu0 %v946
        %1189 = vmatpush1.bf16.msra.mxu0 %v945
        %1190 = vmatprep.subr.bf16.mxu0 %v950
        %1191 = vmatpush1.bf16.msra.mxu0 %v949
        %1192 = vmatprep.subr.bf16.mxu0 %v954
        %1193 = vmatpush1.bf16.msra.mxu0 %v953
        %1194 = vmatprep.subr.bf16.mxu0 %v958
        %1195 = vmatpush1.bf16.msra.mxu0 %v957
        %1196 = vmatprep.subr.bf16.mxu0 %v962
        %1197 = vmatpush1.bf16.msra.mxu0 %v961
        %1198 = vmatprep.mubr.bf16.mxu0 %v424
        %1199 = vmatmul.mubr.bf16.gmra.mrb[0].mxu0 %v423
        %v1200 = vpop.f32.mrb[0].mxu0
        %v1201 = vadd.f32 %v1128, %v1200
        %v1202 = vpop.f32.mrb[0].mxu0
        %v1203 = vadd.f32 %v1130, %v1202
        %v1204 = vpop.f32.mrb[0].mxu0
        %v1205 = vadd.f32 %v1132, %v1204
        %v1206 = vpop.f32.mrb[0].mxu0
        %v1207 = vadd.f32 %v1134, %v1206
        %1208 = vmatprep.mubr.bf16.mxu0 %v428
        %1209 = vmatmul.mubr.bf16.gmra.mrb[0].mxu0 %v427
        %v1210 = vpop.f32.mrb[0].mxu0
        %v1211 = vadd.f32 %v1138, %v1210
        %v1212 = vpop.f32.mrb[0].mxu0
        %v1213 = vadd.f32 %v1140, %v1212
        %v1214 = vpop.f32.mrb[0].mxu0
        %v1215 = vadd.f32 %v1142, %v1214
        %v1216 = vpop.f32.mrb[0].mxu0
        %v1217 = vadd.f32 %v1144, %v1216
        %1218 = vmatprep.mubr.bf16.mxu0 %v432
        %1219 = vmatmul.mubr.bf16.gmra.mrb[0].mxu0 %v431
        %v1220 = vpop.f32.mrb[0].mxu0
        %v1221 = vadd.f32 %v1148, %v1220
        %v1222 = vpop.f32.mrb[0].mxu0
        %v1223 = vadd.f32 %v1150, %v1222
        %v1224 = vpop.f32.mrb[0].mxu0
        %v1225 = vadd.f32 %v1152, %v1224
        %v1226 = vpop.f32.mrb[0].mxu0
        %v1227 = vadd.f32 %v1154, %v1226
        %1228 = vmatprep.mubr.bf16.mxu0 %v436
        %1229 = vmatmul.mubr.bf16.gmra.mrb[0].mxu0 %v435
        %v1230 = vpop.f32.mrb[0].mxu0
        %v1231 = vadd.f32 %v1158, %v1230
        %v1232 = vpop.f32.mrb[0].mxu0
        %v1233 = vadd.f32 %v1160, %v1232
        %v1234 = vpop.f32.mrb[0].mxu0
        %v1235 = vadd.f32 %v1162, %v1234
        %v1236 = vpop.f32.mrb[0].mxu0
        %v1237 = vadd.f32 %v1164, %v1236
        %1238 = vdwg.mxu0
        %1239 = vmatprep.subr.bf16.mxu0 %v840
        %1240 = vmatpush1.bf16.msra.mxu0 %v839
        %1241 = vmatprep.subr.bf16.mxu0 %v844
        %1242 = vmatpush1.bf16.msra.mxu0 %v843
        %1243 = vmatprep.subr.bf16.mxu0 %v848
        %1244 = vmatpush1.bf16.msra.mxu0 %v847
        %1245 = vmatprep.subr.bf16.mxu0 %v852
        %1246 = vmatpush1.bf16.msra.mxu0 %v851
        %1247 = vmatprep.subr.bf16.mxu0 %v856
        %1248 = vmatpush1.bf16.msra.mxu0 %v855
        %1249 = vmatprep.subr.bf16.mxu0 %v860
        %1250 = vmatpush1.bf16.msra.mxu0 %v859
        %1251 = vmatprep.subr.bf16.mxu0 %v864
        %1252 = vmatpush1.bf16.msra.mxu0 %v863
        %1253 = vmatprep.subr.bf16.mxu0 %v868
        %1254 = vmatpush1.bf16.msra.mxu0 %v867
        %1255 = vmatprep.subr.bf16.mxu0 %v872
        %1256 = vmatpush1.bf16.msra.mxu0 %v871
        %1257 = vmatprep.subr.bf16.mxu0 %v876
        %1258 = vmatpush1.bf16.msra.mxu0 %v875
        %1259 = vmatprep.subr.bf16.mxu0 %v880
        %1260 = vmatpush1.bf16.msra.mxu0 %v879
        %1261 = vmatprep.subr.bf16.mxu0 %v884
        %1262 = vmatpush1.bf16.msra.mxu0 %v883
        %1263 = vmatprep.subr.bf16.mxu0 %v888
        %1264 = vmatpush1.bf16.msra.mxu0 %v887
        %1265 = vmatprep.subr.bf16.mxu0 %v892
        %1266 = vmatpush1.bf16.msra.mxu0 %v891
        %1267 = vmatprep.subr.bf16.mxu0 %v896
        %1268 = vmatpush1.bf16.msra.mxu0 %v895
        %1269 = vmatprep.subr.bf16.mxu0 %v900
        %1270 = vmatpush1.bf16.msra.mxu0 %v899
        %1271 = vmatprep.mubr.bf16.mxu0 %v422
        %1272 = vmatmul.mubr.bf16.gmra.mrb[0].mxu0 %v421
        %v1273 = vpop.f32.mrb[0].mxu0
        %v1274 = vadd.f32 %v364, %v1273
        %v1275 = vpop.f32.mrb[0].mxu0
        %v1276 = vadd.f32 %v368, %v1275
        %v1277 = vpop.f32.mrb[0].mxu0
        %v1278 = vadd.f32 %v364, %v1277
        %v1279 = vpop.f32.mrb[0].mxu0
        %v1280 = vadd.f32 %v368, %v1279
        %1281 = vmatprep.mubr.bf16.mxu0 %v426
        %1282 = vmatmul.mubr.bf16.gmra.mrb[0].mxu0 %v425
        %v1283 = vpop.f32.mrb[0].mxu0
        %v1284 = vadd.f32 %v364, %v1283
        %v1285 = vpop.f32.mrb[0].mxu0
        %v1286 = vadd.f32 %v368, %v1285
        %v1287 = vpop.f32.mrb[0].mxu0
        %v1288 = vadd.f32 %v364, %v1287
        %v1289 = vpop.f32.mrb[0].mxu0
        %v1290 = vadd.f32 %v368, %v1289
        %1291 = vmatprep.mubr.bf16.mxu0 %v430
        %1292 = vmatmul.mubr.bf16.gmra.mrb[0].mxu0 %v429
        %v1293 = vpop.f32.mrb[0].mxu0
        %v1294 = vadd.f32 %v364, %v1293
        %v1295 = vpop.f32.mrb[0].mxu0
        %v1296 = vadd.f32 %v368, %v1295
        %v1297 = vpop.f32.mrb[0].mxu0
        %v1298 = vadd.f32 %v364, %v1297
        %v1299 = vpop.f32.mrb[0].mxu0
        %v1300 = vadd.f32 %v368, %v1299
        %1301 = vmatprep.mubr.bf16.mxu0 %v434
        %1302 = vmatmul.mubr.bf16.gmra.mrb[0].mxu0 %v433
        %v1303 = vpop.f32.mrb[0].mxu0
        %v1304 = vadd.f32 %v364, %v1303
        %v1305 = vpop.f32.mrb[0].mxu0
        %v1306 = vadd.f32 %v368, %v1305
        %v1307 = vpop.f32.mrb[0].mxu0
        %v1308 = vadd.f32 %v364, %v1307
        %v1309 = vpop.f32.mrb[0].mxu0
        %v1310 = vadd.f32 %v368, %v1309
        %1311 = vdwg.mxu0
        %1312 = vmatprep.subr.bf16.mxu0 %v904
        %1313 = vmatpush1.bf16.msra.mxu0 %v903
        %1314 = vmatprep.subr.bf16.mxu0 %v908
        %1315 = vmatpush1.bf16.msra.mxu0 %v907
        %1316 = vmatprep.subr.bf16.mxu0 %v912
        %1317 = vmatpush1.bf16.msra.mxu0 %v911
        %1318 = vmatprep.subr.bf16.mxu0 %v916
        %1319 = vmatpush1.bf16.msra.mxu0 %v915
        %1320 = vmatprep.subr.bf16.mxu0 %v920
        %1321 = vmatpush1.bf16.msra.mxu0 %v919
        %1322 = vmatprep.subr.bf16.mxu0 %v924
        %1323 = vmatpush1.bf16.msra.mxu0 %v923
        %1324 = vmatprep.subr.bf16.mxu0 %v928
        %1325 = vmatpush1.bf16.msra.mxu0 %v927
        %1326 = vmatprep.subr.bf16.mxu0 %v932
        %1327 = vmatpush1.bf16.msra.mxu0 %v931
        %1328 = vmatprep.subr.bf16.mxu0 %v936
        %1329 = vmatpush1.bf16.msra.mxu0 %v935
        %1330 = vmatprep.subr.bf16.mxu0 %v940
        %1331 = vmatpush1.bf16.msra.mxu0 %v939
        %1332 = vmatprep.subr.bf16.mxu0 %v944
        %1333 = vmatpush1.bf16.msra.mxu0 %v943
        %1334 = vmatprep.subr.bf16.mxu0 %v948
        %1335 = vmatpush1.bf16.msra.mxu0 %v947
        %1336 = vmatprep.subr.bf16.mxu0 %v952
        %1337 = vmatpush1.bf16.msra.mxu0 %v951
        %1338 = vmatprep.subr.bf16.mxu0 %v956
        %1339 = vmatpush1.bf16.msra.mxu0 %v955
        %1340 = vmatprep.subr.bf16.mxu0 %v960
        %1341 = vmatpush1.bf16.msra.mxu0 %v959
        %1342 = vmatprep.subr.bf16.mxu0 %v964
        %1343 = vmatpush1.bf16.msra.mxu0 %v963
        %1344 = vmatprep.mubr.bf16.mxu0 %v424
        %1345 = vmatmul.mubr.bf16.gmra.mrb[0].mxu0 %v423
        %v1346 = vpop.f32.mrb[0].mxu0
        %v1347 = vadd.f32 %v1274, %v1346
        %v1348 = vpop.f32.mrb[0].mxu0
        %v1349 = vadd.f32 %v1276, %v1348
        %v1350 = vpop.f32.mrb[0].mxu0
        %v1351 = vadd.f32 %v1278, %v1350
        %v1352 = vpop.f32.mrb[0].mxu0
        %v1353 = vadd.f32 %v1280, %v1352
        %1354 = vmatprep.mubr.bf16.mxu0 %v428
        %1355 = vmatmul.mubr.bf16.gmra.mrb[0].mxu0 %v427
        %v1356 = vpop.f32.mrb[0].mxu0
        %v1357 = vadd.f32 %v1284, %v1356
        %v1358 = vpop.f32.mrb[0].mxu0
        %v1359 = vadd.f32 %v1286, %v1358
        %v1360 = vpop.f32.mrb[0].mxu0
        %v1361 = vadd.f32 %v1288, %v1360
        %v1362 = vpop.f32.mrb[0].mxu0
        %v1363 = vadd.f32 %v1290, %v1362
        %1364 = vmatprep.mubr.bf16.mxu0 %v432
        %1365 = vmatmul.mubr.bf16.gmra.mrb[0].mxu0 %v431
        %v1366 = vpop.f32.mrb[0].mxu0
        %v1367 = vadd.f32 %v1294, %v1366
        %v1368 = vpop.f32.mrb[0].mxu0
        %v1369 = vadd.f32 %v1296, %v1368
        %v1370 = vpop.f32.mrb[0].mxu0
        %v1371 = vadd.f32 %v1298, %v1370
        %v1372 = vpop.f32.mrb[0].mxu0
        %v1373 = vadd.f32 %v1300, %v1372
        %1374 = vmatprep.mubr.bf16.mxu0 %v436
        %1375 = vmatmul.mubr.bf16.gmra.mrb[0].mxu0 %v435
        %v1376 = vpop.f32.mrb[0].mxu0
        %v1377 = vadd.f32 %v1304, %v1376
        %v1378 = vpop.f32.mrb[0].mxu0
        %v1379 = vadd.f32 %v1306, %v1378
        %v1380 = vpop.f32.mrb[0].mxu0
        %v1381 = vadd.f32 %v1308, %v1380
        %v1382 = vpop.f32.mrb[0].mxu0
        %v1383 = vadd.f32 %v1310, %v1382
        %1384 = vdwg.mxu0
        %v1385 = vtanh.pop %v1201
        %v1386 = vtanh.pop %v1203
        %v1387 = vtanh.pop %v1347
        %v1388 = vtanh.pop %v1349
        %v1389 = vtanh.pop %v1205
        %v1390 = vtanh.pop %v1207
        %v1391 = vtanh.pop %v1351
        %v1392 = vtanh.pop %v1353
        %v1393 = vtanh.pop %v1211
        %v1394 = vtanh.pop %v1213
        %v1395 = vtanh.pop %v1357
        %v1396 = vtanh.pop %v1359
        %v1397 = vtanh.pop %v1215
        %v1398 = vtanh.pop %v1217
        %v1399 = vtanh.pop %v1361
        %v1400 = vtanh.pop %v1363
        %v1401 = vtanh.pop %v1221
        %v1402 = vtanh.pop %v1223
        %v1403 = vtanh.pop %v1367
        %v1404 = vtanh.pop %v1369
        %v1405 = vtanh.pop %v1225
        %v1406 = vtanh.pop %v1227
        %v1407 = vtanh.pop %v1371
        %v1408 = vtanh.pop %v1373
        %v1409 = vtanh.pop %v1231
        %v1410 = vtanh.pop %v1233
        %v1411 = vtanh.pop %v1377
        %v1412 = vtanh.pop %v1379
        %v1413 = vtanh.pop %v1235
        %v1414 = vtanh.pop %v1237
        %v1415 = vtanh.pop %v1381
        %v1416 = vtanh.pop %v1383
        %1417 = vst [vmem:[%s204] sm:$0xff] %v1385
        %1418 = vst [vmem:[%s204 + $0x8] sm:$0xff] %v1386
        %1419 = vst [vmem:[%s204 + $0x10] sm:$0xff] %v1387
        %1420 = vst [vmem:[%s204 + $0x18] sm:$0xff] %v1388
        %1421 = vst [vmem:[%s204 + $0x20] sm:$0xff] %v1389
        %1422 = vst [vmem:[%s204 + $0x28] sm:$0xff] %v1390
        %1423 = vst [vmem:[%s204 + $0x30] sm:$0xff] %v1391
        %1424 = vst [vmem:[%s204 + $0x38] sm:$0xff] %v1392
        %1425 = vst [vmem:[%s204 + $0x40] sm:$0xff] %v1393
        %1426 = vst [vmem:[%s204 + $0x48] sm:$0xff] %v1394
        %1427 = vst [vmem:[%s204 + $0x50] sm:$0xff] %v1395
        %1428 = vst [vmem:[%s204 + $0x58] sm:$0xff] %v1396
        %1429 = vst [vmem:[%s204 + $0x60] sm:$0xff] %v1397
        %1430 = vst [vmem:[%s204 + $0x68] sm:$0xff] %v1398
        %1431 = vst [vmem:[%s204 + $0x70] sm:$0xff] %v1399
        %1432 = vst [vmem:[%s204 + $0x78] sm:$0xff] %v1400
        %1433 = vst [vmem:[%s204 + $0x80] sm:$0xff] %v1401
        %1434 = vst [vmem:[%s204 + $0x88] sm:$0xff] %v1402
        %1435 = vst [vmem:[%s204 + $0x90] sm:$0xff] %v1403
        %1436 = vst [vmem:[%s204 + $0x98] sm:$0xff] %v1404
        %1437 = vst [vmem:[%s204 + $0xa0] sm:$0xff] %v1405
        %1438 = vst [vmem:[%s204 + $0xa8] sm:$0xff] %v1406
        %1439 = vst [vmem:[%s204 + $0xb0] sm:$0xff] %v1407
        %1440 = vst [vmem:[%s204 + $0xb8] sm:$0xff] %v1408
        %1441 = vst [vmem:[%s204 + $0xc0] sm:$0xff] %v1409
        %1442 = vst [vmem:[%s204 + $0xc8] sm:$0xff] %v1410
        %1443 = vst [vmem:[%s204 + $0xd0] sm:$0xff] %v1411
        %1444 = vst [vmem:[%s204 + $0xd8] sm:$0xff] %v1412
        %1445 = vst [vmem:[%s204 + $0xe0] sm:$0xff] %v1413
        %1446 = vst [vmem:[%s204 + $0xe8] sm:$0xff] %v1414
        %1447 = vst [vmem:[%s204 + $0xf0] sm:$0xff] %v1415
        %1448 = vst [vmem:[%s204 + $0xf8] sm:$0xff] %v1416
        %s1449 = sand.u32 %s97, 1
        %s1450 = scalar_lea.sflag [#allocation4], %s1449
        %s1451 = sand.u32 %s97, 1
        %s1452 = smul.addr %s1451, 256
        %s1453 = scalar_lea.vmem [#allocation7], %s1452
        // Predicated region
        $region41: #{tpu_custom_call.1} parent=31 // pred_check
          %p1454 = pneg %p107
        $region42: #{tpu_custom_call.1} parent=31 // pred_check_branch
          %1456 = sbr.rel (%p1454) target = $region44
        $region43: #{tpu_custom_call.1} parent=31 // pred_region
          %s1457 = smul.u32 8, %s21
          %s1459 = ssub.s32 4096, 4096
          %1460 = vsyncadd %s1450, %s1459
          %s1461 = smul.addr %s1457, 4
          %s1462 = smul.addr %s1461, 128
          %s1463 = scalar_lea.hbm %s3, %s1462
          %s1464 = sshll.u32 %s1453, 4
          %s1465 = int_to_ptr.vmem [resolvable:$true] %s1464
          %1470 = dma.vmem_to_hbm [thread:$0]  %s1465, 4096, %s1463, %s1450, 512, 512, 32
        $region44: #{tpu_custom_call.1} parent=31 // pred_fallthru
          _
      $region32: #{tpu_custom_call.1} parent=5 // pred_fallthru
        _
      %p1471 = scmp.le.s32.totalorder 2, %s16
      // Predicated region
      $region45: #{tpu_custom_call.1} parent=5 // pred_check
        %p1472 = pneg %p1471
      $region46: #{tpu_custom_call.1} parent=5 // pred_check_branch
        %1474 = sbr.rel (%p1472) target = $region48
      $region47: #{tpu_custom_call.1} parent=5 // pred_region
        %s1475 = ssub.s32 %s16, 2
        // Predicated region
        $region49: #{tpu_custom_call.1} parent=47 // pred_check
          %p1476 = pneg %p113
        $region50: #{tpu_custom_call.1} parent=47 // pred_check_branch
          %1478 = sbr.rel (%p1476) target = $region52
        $region51: #{tpu_custom_call.1} parent=47 // pred_region
          %s1479 = sand.u32 %s98, 1
          %s1480 = scalar_lea.sflag [#allocation4], %s1479
          %s1481 = sand.u32 %s98, 1
          %s1482 = smul.addr %s1481, 256
          %s1483 = scalar_lea.vmem [#allocation7], %s1482
          %1484 = dma.done %s1480, 4096
        $region52: #{tpu_custom_call.1} parent=47 // pred_fallthru
          _
      $region48: #{tpu_custom_call.1} parent=5 // pred_fallthru
        _
    $region6: #{tpu_custom_call.1} parent=1 // loop_footer
      %s20 = sadd.s32 1, %s16
    $region7: #{tpu_custom_call.1} parent=1 // loop_footer_branch
      %15 = sbr.rel target = $region3
    $region8: #{tpu_custom_call.1} parent=1 // loop_exit
      _
    %1485 = vsyncpa [#allocation3], 1
    %s1486 = scalar_lea.sflag [#allocation3], 1
    %1487 = vsyncpa %s1486, 1
    %1488 = vsyncpa [#allocation6], 1
    %1489 = vsyncpa [#allocation4], 1
    %s1490 = scalar_lea.sflag [#allocation4], 1
    %1491 = vsyncpa %s1490, 1

</llo_original>
